<compile_context>
chip_gen: v7x
topology: tpu7x:2x2x1
jax: 0.10.0
libtpu: 0.0.40
codegen_flags: <defaults>
</compile_context>

<pallas_src>
import functools
import math

import jax
import jax.numpy as jnp
import numpy as np
from jax.experimental import pallas as pl
from jax.experimental.pallas import tpu as pltpu


# ----------------------------- helpers ---------------------------------------

def _round_up(a, b):
    return -(-a // b) * b


def _gelu(h):
    # exact (erf) GELU == torch.nn.GELU() default
    return h * 0.5 * (1.0 + jax.lax.erf(h * (1.0 / math.sqrt(2.0))))


def _layernorm(h, gamma, beta, eps=1e-5):
    mu = jnp.mean(h, axis=-1, keepdims=True)
    var = jnp.mean((h - mu) ** 2, axis=-1, keepdims=True)
    return (h - mu) * jax.lax.rsqrt(var + eps) * gamma + beta


# ------------------------------- kernel --------------------------------------

def fourier_embedding2_kernel(
    x_ref,        # [Lp, tm]        (padded channels + const-1 row) x tokens
    d2_ref,       # [2*L*F, Lp]     stacked phase matrix (2*pi folded; -pi/2
                  #                 offset for the sin half folded into the
                  #                 const-1 column of x)
    w1cs_ref,     # [L*H, 2*L*F]    block-diag cos|sin parts of layer 1
    w1x_ref,      # [L*H, Lp]       x-passthrough part of layer 1
    a_ref,        # [L*H, L*H]      block-averaging matrix (1/H within a block)
    w2_ref,       # [H, L*H]        stacked second layers (fuses channel sum)
    aout_ref,     # [H, H]          averaging matrix for the out-head LN
    wo_ref,       # [H, H]          output linear (transposed)
    cols_lh_ref,  # [L*H, 3]        (b1 | gamma1 | beta1) as columns
    cols_h_ref,   # [H, 4]          (sum b2 | gamma_o | beta_o | b_o) as columns
    o_ref,        # [H, tm]
    *,
    sub,
    eps=1e-5,
):
    n_sub = x_ref.shape[1] // sub

    # Hoist the small bias/scale column slices once (JAX does not CSE the
    # implicit lane-broadcasts, so do not re-slice per chunk).  Large weight
    # matrices are re-read from VMEM inside each chunk instead of being pinned
    # in vregs (vld slots have slack; the register file does not).
    b1 = cols_lh_ref[:, 0:1]
    g1 = cols_lh_ref[:, 1:2]
    be1 = cols_lh_ref[:, 2:3]
    b2s = cols_h_ref[:, 0:1]
    g_o = cols_h_ref[:, 1:2]
    be_o = cols_h_ref[:, 2:3]
    b_o = cols_h_ref[:, 3:4]

    def compute_chunk(c0):
        xb = x_ref[:, pl.ds(c0, sub)].astype(jnp.float32)      # [Lp, sub]

        # ---- fused fourier features (single cos) + first layer ----
        ph = jnp.dot(d2_ref[...], xb,
                     preferred_element_type=jnp.float32)       # [2LF, sub]
        c = jnp.cos(ph)                                        # cos | sin
        h = jnp.dot(w1cs_ref[...], c,
                    preferred_element_type=jnp.float32)        # [L*H, sub]
        h = h + jnp.dot(w1x_ref[...], xb,
                        preferred_element_type=jnp.float32)
        h = h + b1

        # ---- per-channel LayerNorm; stats via MXU, var = E[h^2] - mu^2 ----
        a_blk = a_ref[...]
        mu = jnp.dot(a_blk, h, preferred_element_type=jnp.float32)
        m2 = jnp.dot(a_blk, h * h, preferred_element_type=jnp.float32)
        var = m2 - mu * mu
        hn = (h - mu) * jax.lax.rsqrt(var + eps)
        hn = _gelu(hn * g1 + be1)                              # [L*H, sub]

        # ---- fused second layers + channel sum ----
        acc = jnp.dot(w2_ref[...], hn,
                      preferred_element_type=jnp.float32) + b2s  # [H, sub]

        # ---- out head: LayerNorm (MXU stats) + GELU + Linear ----
        a_out = aout_ref[...]
        mu2 = jnp.dot(a_out, acc, preferred_element_type=jnp.float32)
        m22 = jnp.dot(a_out, acc * acc, preferred_element_type=jnp.float32)
        var2 = m22 - mu2 * mu2
        y = (acc - mu2) * jax.lax.rsqrt(var2 + eps)
        y = _gelu(y * g_o + be_o)
        y = jnp.dot(wo_ref[...], y, preferred_element_type=jnp.float32) + b_o

        o_ref[:, pl.ds(c0, sub)] = y.astype(o_ref.dtype)       # lane-dense vst

    if n_sub == 1:
        compute_chunk(0)
    else:
        def body(s, carry):
            compute_chunk(pl.multiple_of(s * sub, sub))
            return carry
        jax.lax.fori_loop(0, n_sub, body, 0, unroll=True)


# ------------------------ parameter packing (wrapper) -------------------------

def pack_params(params):
    """Fold the L per-channel MLPs into a few wide, transposed matrices."""
    dense = np.asarray(params["dense"], np.float32)        # [L, F]
    w1 = np.asarray(params["w1"], np.float32)               # [L, 2F+1, H]
    w2 = np.asarray(params["w2"], np.float32)               # [L, H, H]
    L, F = dense.shape
    H = w1.shape[-1]
    LF = L * F
    Lp = max(8, _round_up(L + 1, 8))        # +1 for the const-1 offset row
    two_pi = 2.0 * math.pi

    d2 = np.zeros((2 * LF, Lp), np.float32)
    w1cs = np.zeros((L * H, 2 * LF), np.float32)
    w1x = np.zeros((L * H, Lp), np.float32)
    for i in range(L):
        d2[i * F:(i + 1) * F, i] = dense[i] * two_pi              # cos rows
        d2[LF + i * F:LF + (i + 1) * F, i] = dense[i] * two_pi    # sin rows
        w1cs[i * H:(i + 1) * H, i * F:(i + 1) * F] = w1[i, :F, :].T
        w1cs[i * H:(i + 1) * H, LF + i * F:LF + (i + 1) * F] = w1[i, F:2 * F, :].T
        w1x[i * H:(i + 1) * H, i] = w1[i, 2 * F, :]
    # sin(z) = cos(z - pi/2): fold the offset into the const-1 row of x.
    d2[LF:, L] = -0.5 * math.pi

    a_blk = np.kron(np.eye(L, dtype=np.float32),
                    np.full((H, H), 1.0 / H, np.float32))          # [L*H, L*H]
    a_out = np.full((H, H), 1.0 / H, np.float32)

    # stacked second layer, transposed + channel-concatenated: [H, L*H]
    w2_stack = w2.transpose(2, 0, 1).reshape(H, L * H)
    wo_t = np.asarray(params["wo"], np.float32).T                  # [H, H]

    cols_lh = np.stack([
        np.asarray(params["b1"], np.float32).reshape(-1),
        np.asarray(params["g1"], np.float32).reshape(-1),
        np.asarray(params["be1"], np.float32).reshape(-1),
    ], axis=1)                                                     # [L*H, 3]
    cols_h = np.stack([
        np.asarray(params["b2"], np.float32).sum(axis=0),
        np.asarray(params["gamma_o"], np.float32),
        np.asarray(params["beta_o"], np.float32),
        np.asarray(params["bo"], np.float32),
    ], axis=1)                                                     # [H, 4]

    to = jnp.asarray
    return dict(d2=to(d2), w1cs=to(w1cs), w1x=to(w1x), a_blk=to(a_blk),
                a_out=to(a_out), w2_stack=to(w2_stack), wo_t=to(wo_t),
                cols_lh=to(cols_lh), cols_h=to(cols_h),
                L=L, Lp=Lp, F=F, H=H)


# ------------------------------- tiling ---------------------------------------

def _choose_tiling(T, sub=128, tm_max=1024):
    """Pick (token tile, in-kernel sub-chunk, padded token count).

    Tokens live on lanes, so everything is a multiple of 128.  The grid-step
    count is forced to be even (v7x has 2 TensorCores) whenever there are at
    least 2 sub-chunks of work; tiles of up to tm_max amortize the per-step
    pipeline overhead.
    """
    Tp = _round_up(T, sub)
    n = Tp // sub
    if n == 1:
        return sub, sub, Tp
    per_max = max(1, tm_max // sub)
    g = 2
    while -(-n // g) > per_max:
        g += 2
    per = -(-n // g)
    tm = per * sub
    return tm, sub, g * tm


# ------------------------------- wrapper --------------------------------------

def fourier_embedding2(x, packed):
    """x: [b, polygons, points, input_size] -> [b, polygons, points, hidden]."""
    b, P, N, L = x.shape
    assert L == packed["L"]
    Lp, H = packed["Lp"], packed["H"]
    T = b * P * N

    tm, sub, T_pad = _choose_tiling(T)

    # Transposed, lane-dense layout: channels on sublanes, tokens on lanes.
    # Compute in f32 regardless of input dtype (phase accuracy, v5e VPU/EUP).
    xt = x.reshape(T, L).astype(jnp.float32).T               # [L, T]
    xt = jnp.pad(xt, ((0, Lp - L), (0, T_pad - T)))          # [Lp, T_pad]
    xt = xt.at[L, :].set(1.0)                                 # const-1 row

    def full(arr):
        nd = arr.ndim
        return pl.BlockSpec(arr.shape, lambda t, _nd=nd: (0,) * _nd)

    kernel = functools.partial(fourier_embedding2_kernel, sub=sub)

    out_t = pl.pallas_call(
        kernel,
        out_shape=jax.ShapeDtypeStruct((H, T_pad), jnp.float32),
        grid_spec=pltpu.PrefetchScalarGridSpec(
            num_scalar_prefetch=0,
            grid=(T_pad // tm,),
            in_specs=[
                pl.BlockSpec((Lp, tm), lambda t: (0, t)),     # token tile
                full(packed["d2"]),
                full(packed["w1cs"]),
                full(packed["w1x"]),
                full(packed["a_blk"]),
                full(packed["w2_stack"]),
                full(packed["a_out"]),
                full(packed["wo_t"]),
                full(packed["cols_lh"]),
                full(packed["cols_h"]),
            ],
            out_specs=pl.BlockSpec((H, tm), lambda t: (0, t)),
        ),
        compiler_params=pltpu.CompilerParams(
            dimension_semantics=("parallel",),
        ),
    )(
        xt,
        packed["d2"], packed["w1cs"], packed["w1x"], packed["a_blk"],
        packed["w2_stack"], packed["a_out"], packed["wo_t"],
        packed["cols_lh"], packed["cols_h"],
    )
    out = out_t[:, :T].T.reshape(b, P, N, H)
    return out.astype(x.dtype)


# --------------------------- pure-JAX reference --------------------------------

def fourier_embedding2_ref(x, params):
    L = x.shape[-1]
    phase = jnp.einsum("ijkl,lh->ijklh", x, params["dense"]) * (2.0 * math.pi)
    feat = jnp.concatenate(
        [jnp.cos(phase), jnp.sin(phase), x[..., None]], axis=-1
    )  # [b,P,N,L,2F+1]
    acc = 0.0
    for i in range(L):
        h = feat[:, :, :, i] @ params["w1"][i] + params["b1"][i]
        h = _layernorm(h, params["g1"][i], params["be1"][i])
        h = _gelu(h)
        h = h @ params["w2"][i] + params["b2"][i]
        acc = acc + h
    h = _layernorm(acc, params["gamma_o"], params["beta_o"])
    h = _gelu(h)
    return h @ params["wo"] + params["bo"]


# ---------------------------------- init ---------------------------------------

def init_params(key, input_size, hidden_size, freq_bands):
    L, H, F = input_size, hidden_size, freq_bands
    ks = jax.random.split(key, 12)
    scale1 = 1.0 / math.sqrt(2 * F + 1)
    scale2 = 1.0 / math.sqrt(H)
    return {
        "dense": jax.random.normal(ks[0], (L, F), jnp.float32),
        "w1": jax.random.normal(ks[1], (L, 2 * F + 1, H), jnp.float32) * scale1,
        "b1": jax.random.normal(ks[2], (L, H), jnp.float32) * 0.01,
        "g1": 1.0 + 0.1 * jax.random.normal(ks[3], (L, H), jnp.float32),
        "be1": 0.1 * jax.random.normal(ks[4], (L, H), jnp.float32),
        "w2": jax.random.normal(ks[5], (L, H, H), jnp.float32) * scale2,
        "b2": jax.random.normal(ks[6], (L, H), jnp.float32) * 0.01,
        "gamma_o": 1.0 + 0.1 * jax.random.normal(ks[7], (H,), jnp.float32),
        "beta_o": 0.1 * jax.random.normal(ks[8], (H,), jnp.float32),
        "wo": jax.random.normal(ks[9], (H, H), jnp.float32) * scale2,
        "bo": jax.random.normal(ks[10], (H,), jnp.float32) * 0.01,
    }


# ---------------------------------- main ----------------------------------------

if __name__ == "__main__":
    key = jax.random.PRNGKey(0)
    k_x, k_p = jax.random.split(key)

    b, polygons, points, input_size = 2, 4, 8, 3
    hidden_size, freq_bands = 32, 8

    x = jax.random.normal(k_x, (b, polygons, points, input_size), jnp.float32)
    params = init_params(k_p, input_size, hidden_size, freq_bands)
    packed = pack_params(params)

    out = jax.block_until_ready(fourier_embedding2(x, packed))
    ref = jax.block_until_ready(fourier_embedding2_ref(x, params))

    assert out.shape == (b, polygons, points, hidden_size)
    np.testing.assert_allclose(np.asarray(out), np.asarray(ref),
                               rtol=5e-4, atol=5e-4)
    print("KERNEL_OK")
</pallas_src>

<mosaic_0001>
module attributes {stable_mosaic.version = 11 : i64} {
  func.func @fourier_embedding2_kernel(%arg0: i32, %arg1: memref<8x128xf32, #tpu.memory_space<vmem>>, %arg2: memref<48x8xf32, #tpu.memory_space<vmem>>, %arg3: memref<96x48xf32, #tpu.memory_space<vmem>>, %arg4: memref<96x8xf32, #tpu.memory_space<vmem>>, %arg5: memref<96x96xf32, #tpu.memory_space<vmem>>, %arg6: memref<32x96xf32, #tpu.memory_space<vmem>>, %arg7: memref<32x32xf32, #tpu.memory_space<vmem>>, %arg8: memref<32x32xf32, #tpu.memory_space<vmem>>, %arg9: memref<96x3xf32, #tpu.memory_space<vmem>>, %arg10: memref<32x4xf32, #tpu.memory_space<vmem>>, %arg11: memref<32x128xf32, #tpu.memory_space<vmem>>) attributes {dimension_semantics = [#tpu.dimension_semantics<parallel>], iteration_bounds = array<i64: 1>, scalar_prefetch = 0 : i64, scratch_operands = 0 : i64, tpu.core_type = #tpu.core_type<tc>, window_params = [{transform_indices = @transform_0, window_bounds = array<i64: 8, 128>}, {pipeline_mode = #tpu.pipeline_mode<synchronous>, transform_indices = @transform_1, window_bounds = array<i64: 48, 8>}, {pipeline_mode = #tpu.pipeline_mode<synchronous>, transform_indices = @transform_2, window_bounds = array<i64: 96, 48>}, {pipeline_mode = #tpu.pipeline_mode<synchronous>, transform_indices = @transform_3, window_bounds = array<i64: 96, 8>}, {pipeline_mode = #tpu.pipeline_mode<synchronous>, transform_indices = @transform_4, window_bounds = array<i64: 96, 96>}, {pipeline_mode = #tpu.pipeline_mode<synchronous>, transform_indices = @transform_5, window_bounds = array<i64: 32, 96>}, {pipeline_mode = #tpu.pipeline_mode<synchronous>, transform_indices = @transform_6, window_bounds = array<i64: 32, 32>}, {pipeline_mode = #tpu.pipeline_mode<synchronous>, transform_indices = @transform_7, window_bounds = array<i64: 32, 32>}, {pipeline_mode = #tpu.pipeline_mode<synchronous>, transform_indices = @transform_8, window_bounds = array<i64: 96, 3>}, {pipeline_mode = #tpu.pipeline_mode<synchronous>, transform_indices = @transform_9, window_bounds = array<i64: 32, 4>}, {transform_indices = @transform_10, window_bounds = array<i64: 32, 128>}]} {
    %c0 = arith.constant 0 : index
    %c0_0 = arith.constant 0 : index
    %0 = vector.load %arg9[%c0, %c0_0] : memref<96x3xf32, #tpu.memory_space<vmem>>, vector<96x1xf32>
    %c0_1 = arith.constant 0 : index
    %c1 = arith.constant 1 : index
    %1 = vector.load %arg9[%c0_1, %c1] : memref<96x3xf32, #tpu.memory_space<vmem>>, vector<96x1xf32>
    %c0_2 = arith.constant 0 : index
    %c2 = arith.constant 2 : index
    %2 = vector.load %arg9[%c0_2, %c2] : memref<96x3xf32, #tpu.memory_space<vmem>>, vector<96x1xf32>
    %c0_3 = arith.constant 0 : index
    %c0_4 = arith.constant 0 : index
    %3 = vector.load %arg10[%c0_3, %c0_4] : memref<32x4xf32, #tpu.memory_space<vmem>>, vector<32x1xf32>
    %c0_5 = arith.constant 0 : index
    %c1_6 = arith.constant 1 : index
    %4 = vector.load %arg10[%c0_5, %c1_6] : memref<32x4xf32, #tpu.memory_space<vmem>>, vector<32x1xf32>
    %c0_7 = arith.constant 0 : index
    %c2_8 = arith.constant 2 : index
    %5 = vector.load %arg10[%c0_7, %c2_8] : memref<32x4xf32, #tpu.memory_space<vmem>>, vector<32x1xf32>
    %c0_9 = arith.constant 0 : index
    %c3 = arith.constant 3 : index
    %6 = vector.load %arg10[%c0_9, %c3] : memref<32x4xf32, #tpu.memory_space<vmem>>, vector<32x1xf32>
    %c0_10 = arith.constant 0 : index
    %c0_11 = arith.constant 0 : index
    %7 = vector.load %arg1[%c0_10, %c0_11] : memref<8x128xf32, #tpu.memory_space<vmem>>, vector<8x128xf32>
    %c0_12 = arith.constant 0 : index
    %c0_13 = arith.constant 0 : index
    %8 = vector.load %arg2[%c0_12, %c0_13] : memref<48x8xf32, #tpu.memory_space<vmem>>, vector<48x8xf32>
    %cst = arith.constant dense<0.000000e+00> : vector<48x128xf32>
    %9 = tpu.matmul %8, %7, %cst {dimension_numbers = #tpu.dot_dimension_numbers<[1], [0], [0], [1], [0, 0, 1, 1], [], []>} : vector<48x8xf32>, vector<8x128xf32>, vector<48x128xf32> -> vector<48x128xf32>
    %10 = math.cos %9 : vector<48x128xf32>
    %c0_14 = arith.constant 0 : index
    %c0_15 = arith.constant 0 : index
    %11 = vector.load %arg3[%c0_14, %c0_15] : memref<96x48xf32, #tpu.memory_space<vmem>>, vector<96x48xf32>
    %cst_16 = arith.constant dense<0.000000e+00> : vector<96x128xf32>
    %12 = tpu.matmul %11, %10, %cst_16 {dimension_numbers = #tpu.dot_dimension_numbers<[1], [0], [0], [1], [0, 0, 1, 1], [], []>} : vector<96x48xf32>, vector<48x128xf32>, vector<96x128xf32> -> vector<96x128xf32>
    %c0_17 = arith.constant 0 : index
    %c0_18 = arith.constant 0 : index
    %13 = vector.load %arg4[%c0_17, %c0_18] : memref<96x8xf32, #tpu.memory_space<vmem>>, vector<96x8xf32>
    %cst_19 = arith.constant dense<0.000000e+00> : vector<96x128xf32>
    %14 = tpu.matmul %13, %7, %cst_19 {dimension_numbers = #tpu.dot_dimension_numbers<[1], [0], [0], [1], [0, 0, 1, 1], [], []>} : vector<96x8xf32>, vector<8x128xf32>, vector<96x128xf32> -> vector<96x128xf32>
    %15 = arith.addf %12, %14 : vector<96x128xf32>
    %16 = vector.broadcast %0 : vector<96x1xf32> to vector<96x128xf32>
    %17 = arith.addf %15, %16 : vector<96x128xf32>
    %c0_20 = arith.constant 0 : index
    %c0_21 = arith.constant 0 : index
    %18 = vector.load %arg5[%c0_20, %c0_21] : memref<96x96xf32, #tpu.memory_space<vmem>>, vector<96x96xf32>
    %cst_22 = arith.constant dense<0.000000e+00> : vector<96x128xf32>
    %19 = tpu.matmul %18, %17, %cst_22 {dimension_numbers = #tpu.dot_dimension_numbers<[1], [0], [0], [1], [0, 0, 1, 1], [], []>} : vector<96x96xf32>, vector<96x128xf32>, vector<96x128xf32> -> vector<96x128xf32>
    %20 = arith.mulf %17, %17 : vector<96x128xf32>
    %cst_23 = arith.constant dense<0.000000e+00> : vector<96x128xf32>
    %21 = tpu.matmul %18, %20, %cst_23 {dimension_numbers = #tpu.dot_dimension_numbers<[1], [0], [0], [1], [0, 0, 1, 1], [], []>} : vector<96x96xf32>, vector<96x128xf32>, vector<96x128xf32> -> vector<96x128xf32>
    %22 = arith.mulf %19, %19 : vector<96x128xf32>
    %23 = arith.subf %21, %22 : vector<96x128xf32>
    %24 = arith.subf %17, %19 : vector<96x128xf32>
    %cst_24 = arith.constant 9.99999974E-6 : f32
    %25 = vector.broadcast %cst_24 : f32 to vector<96x128xf32>
    %26 = arith.addf %23, %25 : vector<96x128xf32>
    %27 = math.rsqrt %26 : vector<96x128xf32>
    %28 = arith.mulf %24, %27 : vector<96x128xf32>
    %29 = vector.broadcast %1 : vector<96x1xf32> to vector<96x128xf32>
    %30 = arith.mulf %28, %29 : vector<96x128xf32>
    %31 = vector.broadcast %2 : vector<96x1xf32> to vector<96x128xf32>
    %32 = arith.addf %30, %31 : vector<96x128xf32>
    %cst_25 = arith.constant 5.000000e-01 : f32
    %33 = vector.broadcast %cst_25 : f32 to vector<96x128xf32>
    %34 = arith.mulf %32, %33 : vector<96x128xf32>
    %cst_26 = arith.constant 0.707106769 : f32
    %35 = vector.broadcast %cst_26 : f32 to vector<96x128xf32>
    %36 = arith.mulf %32, %35 : vector<96x128xf32>
    %37 = math.erf %36 : vector<96x128xf32>
    %cst_27 = arith.constant 1.000000e+00 : f32
    %38 = vector.broadcast %cst_27 : f32 to vector<96x128xf32>
    %39 = arith.addf %38, %37 : vector<96x128xf32>
    %40 = arith.mulf %34, %39 : vector<96x128xf32>
    %c0_28 = arith.constant 0 : index
    %c0_29 = arith.constant 0 : index
    %41 = vector.load %arg6[%c0_28, %c0_29] : memref<32x96xf32, #tpu.memory_space<vmem>>, vector<32x96xf32>
    %cst_30 = arith.constant dense<0.000000e+00> : vector<32x128xf32>
    %42 = tpu.matmul %41, %40, %cst_30 {dimension_numbers = #tpu.dot_dimension_numbers<[1], [0], [0], [1], [0, 0, 1, 1], [], []>} : vector<32x96xf32>, vector<96x128xf32>, vector<32x128xf32> -> vector<32x128xf32>
    %43 = vector.broadcast %3 : vector<32x1xf32> to vector<32x128xf32>
    %44 = arith.addf %42, %43 : vector<32x128xf32>
    %c0_31 = arith.constant 0 : index
    %c0_32 = arith.constant 0 : index
    %45 = vector.load %arg7[%c0_31, %c0_32] : memref<32x32xf32, #tpu.memory_space<vmem>>, vector<32x32xf32>
    %cst_33 = arith.constant dense<0.000000e+00> : vector<32x128xf32>
    %46 = tpu.matmul %45, %44, %cst_33 {dimension_numbers = #tpu.dot_dimension_numbers<[1], [0], [0], [1], [0, 0, 1, 1], [], []>} : vector<32x32xf32>, vector<32x128xf32>, vector<32x128xf32> -> vector<32x128xf32>
    %47 = arith.mulf %44, %44 : vector<32x128xf32>
    %cst_34 = arith.constant dense<0.000000e+00> : vector<32x128xf32>
    %48 = tpu.matmul %45, %47, %cst_34 {dimension_numbers = #tpu.dot_dimension_numbers<[1], [0], [0], [1], [0, 0, 1, 1], [], []>} : vector<32x32xf32>, vector<32x128xf32>, vector<32x128xf32> -> vector<32x128xf32>
    %49 = arith.mulf %46, %46 : vector<32x128xf32>
    %50 = arith.subf %48, %49 : vector<32x128xf32>
    %51 = arith.subf %44, %46 : vector<32x128xf32>
    %cst_35 = arith.constant 9.99999974E-6 : f32
    %52 = vector.broadcast %cst_35 : f32 to vector<32x128xf32>
    %53 = arith.addf %50, %52 : vector<32x128xf32>
    %54 = math.rsqrt %53 : vector<32x128xf32>
    %55 = arith.mulf %51, %54 : vector<32x128xf32>
    %56 = vector.broadcast %4 : vector<32x1xf32> to vector<32x128xf32>
    %57 = arith.mulf %55, %56 : vector<32x128xf32>
    %58 = vector.broadcast %5 : vector<32x1xf32> to vector<32x128xf32>
    %59 = arith.addf %57, %58 : vector<32x128xf32>
    %cst_36 = arith.constant 5.000000e-01 : f32
    %60 = vector.broadcast %cst_36 : f32 to vector<32x128xf32>
    %61 = arith.mulf %59, %60 : vector<32x128xf32>
    %cst_37 = arith.constant 0.707106769 : f32
    %62 = vector.broadcast %cst_37 : f32 to vector<32x128xf32>
    %63 = arith.mulf %59, %62 : vector<32x128xf32>
    %64 = math.erf %63 : vector<32x128xf32>
    %cst_38 = arith.constant 1.000000e+00 : f32
    %65 = vector.broadcast %cst_38 : f32 to vector<32x128xf32>
    %66 = arith.addf %65, %64 : vector<32x128xf32>
    %67 = arith.mulf %61, %66 : vector<32x128xf32>
    %c0_39 = arith.constant 0 : index
    %c0_40 = arith.constant 0 : index
    %68 = vector.load %arg8[%c0_39, %c0_40] : memref<32x32xf32, #tpu.memory_space<vmem>>, vector<32x32xf32>
    %cst_41 = arith.constant dense<0.000000e+00> : vector<32x128xf32>
    %69 = tpu.matmul %68, %67, %cst_41 {dimension_numbers = #tpu.dot_dimension_numbers<[1], [0], [0], [1], [0, 0, 1, 1], [], []>} : vector<32x32xf32>, vector<32x128xf32>, vector<32x128xf32> -> vector<32x128xf32>
    %70 = vector.broadcast %6 : vector<32x1xf32> to vector<32x128xf32>
    %71 = arith.addf %69, %70 : vector<32x128xf32>
    %c0_42 = arith.constant 0 : index
    %c0_43 = arith.constant 0 : index
    %72 = vector.load %arg11[%c0_42, %c0_43] : memref<32x128xf32, #tpu.memory_space<vmem>>, vector<32x128xf32>
    tpu.vector_store %arg11[%c0_42, %c0_43], %71 {strides = array<i32>} : memref<32x128xf32, #tpu.memory_space<vmem>>, vector<32x128xf32>,
    return
  }
  func.func @transform_0(%arg0: i32) -> (i32, i32) {
    %c0_i32 = arith.constant 0 : i32
    %c0_i32_0 = arith.constant 0 : i32
    return %c0_i32, %arg0 : i32, i32
  }
  func.func @transform_1(%arg0: i32) -> (i32, i32) {
    %c0_i32 = arith.constant 0 : i32
    %c0_i32_0 = arith.constant 0 : i32
    %c0_i32_1 = arith.constant 0 : i32
    return %c0_i32, %c0_i32_0 : i32, i32
  }
  func.func @transform_2(%arg0: i32) -> (i32, i32) {
    %c0_i32 = arith.constant 0 : i32
    %c0_i32_0 = arith.constant 0 : i32
    %c0_i32_1 = arith.constant 0 : i32
    return %c0_i32, %c0_i32_0 : i32, i32
  }
  func.func @transform_3(%arg0: i32) -> (i32, i32) {
    %c0_i32 = arith.constant 0 : i32
    %c0_i32_0 = arith.constant 0 : i32
    %c0_i32_1 = arith.constant 0 : i32
    return %c0_i32, %c0_i32_0 : i32, i32
  }
  func.func @transform_4(%arg0: i32) -> (i32, i32) {
    %c0_i32 = arith.constant 0 : i32
    %c0_i32_0 = arith.constant 0 : i32
    %c0_i32_1 = arith.constant 0 : i32
    return %c0_i32, %c0_i32_0 : i32, i32
  }
  func.func @transform_5(%arg0: i32) -> (i32, i32) {
    %c0_i32 = arith.constant 0 : i32
    %c0_i32_0 = arith.constant 0 : i32
    %c0_i32_1 = arith.constant 0 : i32
    return %c0_i32, %c0_i32_0 : i32, i32
  }
  func.func @transform_6(%arg0: i32) -> (i32, i32) {
    %c0_i32 = arith.constant 0 : i32
    %c0_i32_0 = arith.constant 0 : i32
    %c0_i32_1 = arith.constant 0 : i32
    return %c0_i32, %c0_i32_0 : i32, i32
  }
  func.func @transform_7(%arg0: i32) -> (i32, i32) {
    %c0_i32 = arith.constant 0 : i32
    %c0_i32_0 = arith.constant 0 : i32
    %c0_i32_1 = arith.constant 0 : i32
    return %c0_i32, %c0_i32_0 : i32, i32
  }
  func.func @transform_8(%arg0: i32) -> (i32, i32) {
    %c0_i32 = arith.constant 0 : i32
    %c0_i32_0 = arith.constant 0 : i32
    %c0_i32_1 = arith.constant 0 : i32
    return %c0_i32, %c0_i32_0 : i32, i32
  }
  func.func @transform_9(%arg0: i32) -> (i32, i32) {
    %c0_i32 = arith.constant 0 : i32
    %c0_i32_0 = arith.constant 0 : i32
    %c0_i32_1 = arith.constant 0 : i32
    return %c0_i32, %c0_i32_0 : i32, i32
  }
  func.func @transform_10(%arg0: i32) -> (i32, i32) {
    %c0_i32 = arith.constant 0 : i32
    %c0_i32_0 = arith.constant 0 : i32
    return %c0_i32, %arg0 : i32, i32
  }
}

</mosaic_0001>

<llo_original>
// kernel: tpu_custom_call.1
$region0: #{tpu_custom_call.1}
  #allocation0 [shape = 'u32[]', space=smem, size = 0x4, offset = 0x4, fixed_abs, tag = 'smem constant byte address 0x4 - core index']
  #allocation1 [shape = 'u32[144,128]{1,0:T(1,128)}', space=vmem, size = 0x12000, scoped, tag = 'internal scratch']
  %s0 = inlined_call_operand.vmem [shape: f32[8,128], index: 0, kind: input, shape index: {}]
  %s1 = inlined_call_operand.vmem [shape: f32[48,8], index: 1, kind: input, shape index: {}]
  %s2 = inlined_call_operand.vmem [shape: f32[96,48], index: 2, kind: input, shape index: {}]
  %s3 = inlined_call_operand.vmem [shape: f32[96,8], index: 3, kind: input, shape index: {}]
  %s4 = inlined_call_operand.vmem [shape: f32[96,96], index: 4, kind: input, shape index: {}]
  %s5 = inlined_call_operand.vmem [shape: f32[32,96], index: 5, kind: input, shape index: {}]
  %s6 = inlined_call_operand.vmem [shape: f32[32,32], index: 6, kind: input, shape index: {}]
  %s7 = inlined_call_operand.vmem [shape: f32[32,32], index: 7, kind: input, shape index: {}]
  %s8 = inlined_call_operand.vmem [shape: f32[96,3], index: 8, kind: input, shape index: {}]
  %s9 = inlined_call_operand.vmem [shape: f32[32,4], index: 9, kind: input, shape index: {}]
  %s10 = inlined_call_operand.hbm [shape: f32[32,128], index: 10, kind: output, shape index: {}]
  %s11 = sld [smem:[#allocation0]]
  $region50: #{tpu_custom_call.1} parent=0
    _
  %s13 = ssub.s32 1, %s11
  %s14 = scalar_select 0, %s13, %s11
  $region1: #{tpu_custom_call.1} parent=0
    #allocation2 [shape = 'u8[16384]{0}', space=vmem, size = 0x4000, scoped, tag = 'output window, operand 0, single buffered']
    #allocation3 [shape = 's32[1]{0}', space=sflag, size = 0x4, scoped, tag = 'scoped memory for tpu_custom_call.1']
    %15 = vsyncpa [#allocation3], 0
    // Predicated region
    $region2: #{tpu_custom_call.1} parent=1 // pred_check
      _
    $region3: #{tpu_custom_call.1} parent=1 // pred_check_branch
      %17 = sbr.rel (0) target = $region5
    $region4: #{tpu_custom_call.1} parent=1 // pred_region
      _
    $region5: #{tpu_custom_call.1} parent=1 // pred_fallthru
      _
    // Predicated region
    $region6: #{tpu_custom_call.1} parent=1 // pred_check
      _
    $region7: #{tpu_custom_call.1} parent=1 // pred_check_branch
      %19 = sbr.rel (0) target = $region9
    $region8: #{tpu_custom_call.1} parent=1 // pred_region
      _
    $region9: #{tpu_custom_call.1} parent=1 // pred_fallthru
      _
    // Predicated region
    $region10: #{tpu_custom_call.1} parent=1 // pred_check
      _
    $region11: #{tpu_custom_call.1} parent=1 // pred_check_branch
      %21 = sbr.rel (0) target = $region13
    $region12: #{tpu_custom_call.1} parent=1 // pred_region
      _
    $region13: #{tpu_custom_call.1} parent=1 // pred_fallthru
      _
    // Predicated region
    $region14: #{tpu_custom_call.1} parent=1 // pred_check
      _
    $region15: #{tpu_custom_call.1} parent=1 // pred_check_branch
      %23 = sbr.rel (0) target = $region17
    $region16: #{tpu_custom_call.1} parent=1 // pred_region
      _
    $region17: #{tpu_custom_call.1} parent=1 // pred_fallthru
      _
    // Predicated region
    $region18: #{tpu_custom_call.1} parent=1 // pred_check
      _
    $region19: #{tpu_custom_call.1} parent=1 // pred_check_branch
      %25 = sbr.rel (0) target = $region21
    $region20: #{tpu_custom_call.1} parent=1 // pred_region
      _
    $region21: #{tpu_custom_call.1} parent=1 // pred_fallthru
      _
    // Predicated region
    $region22: #{tpu_custom_call.1} parent=1 // pred_check
      _
    $region23: #{tpu_custom_call.1} parent=1 // pred_check_branch
      %27 = sbr.rel (0) target = $region25
    $region24: #{tpu_custom_call.1} parent=1 // pred_region
      _
    $region25: #{tpu_custom_call.1} parent=1 // pred_fallthru
      _
    // Predicated region
    $region26: #{tpu_custom_call.1} parent=1 // pred_check
      _
    $region27: #{tpu_custom_call.1} parent=1 // pred_check_branch
      %29 = sbr.rel (0) target = $region29
    $region28: #{tpu_custom_call.1} parent=1 // pred_region
      _
    $region29: #{tpu_custom_call.1} parent=1 // pred_fallthru
      _
    // Predicated region
    $region30: #{tpu_custom_call.1} parent=1 // pred_check
      _
    $region31: #{tpu_custom_call.1} parent=1 // pred_check_branch
      %31 = sbr.rel (0) target = $region33
    $region32: #{tpu_custom_call.1} parent=1 // pred_region
      _
    $region33: #{tpu_custom_call.1} parent=1 // pred_fallthru
      _
    // Predicated region
    $region34: #{tpu_custom_call.1} parent=1 // pred_check
      _
    $region35: #{tpu_custom_call.1} parent=1 // pred_check_branch
      %33 = sbr.rel (0) target = $region37
    $region36: #{tpu_custom_call.1} parent=1 // pred_region
      _
    $region37: #{tpu_custom_call.1} parent=1 // pred_fallthru
      _
    // Predicated region
    $region38: #{tpu_custom_call.1} parent=1 // pred_check
      _
    $region39: #{tpu_custom_call.1} parent=1 // pred_check_branch
      %35 = sbr.rel (0) target = $region41
    $region40: #{tpu_custom_call.1} parent=1 // pred_region
      _
    $region41: #{tpu_custom_call.1} parent=1 // pred_fallthru
      _
    %v36 = vld [vmem:[%s8] sm:$0xff]
    %v37 = vld [vmem:[%s8 + $0x8] sm:$0xff]
    %v38 = vld [vmem:[%s8 + $0x10] sm:$0xff]
    %v39 = vld [vmem:[%s8 + $0x18] sm:$0xff]
    %v40 = vld [vmem:[%s8 + $0x20] sm:$0xff]
    %v41 = vld [vmem:[%s8 + $0x28] sm:$0xff]
    %v42 = vld [vmem:[%s8 + $0x30] sm:$0xff]
    %v43 = vld [vmem:[%s8 + $0x38] sm:$0xff]
    %v44 = vld [vmem:[%s8 + $0x40] sm:$0xff]
    %v45 = vld [vmem:[%s8 + $0x48] sm:$0xff]
    %v46 = vld [vmem:[%s8 + $0x50] sm:$0xff]
    %v47 = vld [vmem:[%s8 + $0x58] sm:$0xff]
    %v48 = vld [vmem:[%s9] sm:$0xff]
    %v49 = vld [vmem:[%s9 + $0x8] sm:$0xff]
    %v50 = vld [vmem:[%s9 + $0x10] sm:$0xff]
    %v51 = vld [vmem:[%s9 + $0x18] sm:$0xff]
    %v52 = vld [vmem:[%s0] sm:$0xff]
    %v53 = vld [vmem:[%s1] sm:$0xff]
    %v54 = vld [vmem:[%s1 + $0x8] sm:$0xff]
    %v55 = vld [vmem:[%s1 + $0x10] sm:$0xff]
    %v56 = vld [vmem:[%s1 + $0x18] sm:$0xff]
    %v57 = vld [vmem:[%s1 + $0x20] sm:$0xff]
    %v58 = vld [vmem:[%s1 + $0x28] sm:$0xff]
    %vm59 = vcmask 64512
    %v61 = vsel %vm59, %v53, 0
    %v64 = vsel %vm59, %v54, 0
    %v67 = vsel %vm59, %v55, 0
    %v70 = vsel %vm59, %v56, 0
    %v73 = vsel %vm59, %v57, 0
    %v76 = vsel %vm59, %v58, 0
    %78 = vmatprep.subr.mxu0 0.0
    %79 = vmatpush1.msra.mxu0 %v52
    %80 = vmatprep.subr.mxu0 0.0
    %81 = vmatpush1.msra.mxu0 0.0
    %82 = vmatprep.subr.mxu0 0.0
    %83 = vmatpush1.msra.mxu0 0.0
    %84 = vmatprep.subr.mxu0 0.0
    %85 = vmatpush1.msra.mxu0 0.0
    %86 = vmatprep.subr.mxu0 0.0
    %87 = vmatpush1.msra.mxu0 0.0
    %88 = vmatprep.subr.mxu0 0.0
    %89 = vmatpush1.msra.mxu0 0.0
    %90 = vmatprep.subr.mxu0 0.0
    %91 = vmatpush1.msra.mxu0 0.0
    %92 = vmatprep.subr.mxu0 0.0
    %93 = vmatpush1.msra.mxu0 0.0
    %94 = vmatprep.subr.mxu0 0.0
    %95 = vmatpush1.msra.mxu0 0.0
    %96 = vmatprep.subr.mxu0 0.0
    %97 = vmatpush1.msra.mxu0 0.0
    %98 = vmatprep.subr.mxu0 0.0
    %99 = vmatpush1.msra.mxu0 0.0
    %100 = vmatprep.subr.mxu0 0.0
    %101 = vmatpush1.msra.mxu0 0.0
    %102 = vmatprep.subr.mxu0 0.0
    %103 = vmatpush1.msra.mxu0 0.0
    %104 = vmatprep.subr.mxu0 0.0
    %105 = vmatpush1.msra.mxu0 0.0
    %106 = vmatprep.subr.mxu0 0.0
    %107 = vmatpush1.msra.mxu0 0.0
    %108 = vmatprep.subr.mxu0 0.0
    %109 = vmatpush1.msra.mxu0 0.0
    %110 = vmatprep.subr.mxu0 0.0
    %111 = vmatpush1.msra.mxu0 0.0
    %112 = vmatprep.subr.mxu0 0.0
    %113 = vmatpush1.msra.mxu0 0.0
    %114 = vmatprep.subr.mxu0 0.0
    %115 = vmatpush1.msra.mxu0 0.0
    %116 = vmatprep.subr.mxu0 0.0
    %117 = vmatpush1.msra.mxu0 0.0
    %118 = vmatprep.subr.mxu0 0.0
    %119 = vmatpush1.msra.mxu0 0.0
    %120 = vmatprep.subr.mxu0 0.0
    %121 = vmatpush1.msra.mxu0 0.0
    %122 = vmatprep.subr.mxu0 0.0
    %123 = vmatpush1.msra.mxu0 0.0
    %124 = vmatprep.subr.mxu0 0.0
    %125 = vmatpush1.msra.mxu0 0.0
    %126 = vmatprep.subr.mxu0 0.0
    %127 = vmatpush1.msra.mxu0 0.0
    %128 = vmatprep.subr.mxu0 0.0
    %129 = vmatpush1.msra.mxu0 0.0
    %130 = vmatprep.subr.mxu0 0.0
    %131 = vmatpush1.msra.mxu0 0.0
    %132 = vmatprep.subr.mxu0 0.0
    %133 = vmatpush1.msra.mxu0 0.0
    %134 = vmatprep.subr.mxu0 0.0
    %135 = vmatpush1.msra.mxu0 0.0
    %136 = vmatprep.subr.mxu0 0.0
    %137 = vmatpush1.msra.mxu0 0.0
    %138 = vmatprep.subr.mxu0 0.0
    %139 = vmatpush1.msra.mxu0 0.0
    %140 = vmatprep.subr.mxu0 0.0
    %141 = vmatpush1.msra.mxu0 0.0
    %142 = vmatprep.mubr.f32.mxu0 0.0
    %143 = vmatmul.mubr.f32.gmra.mrb[0].mxu0 %v61
    %v144 = vpop.f32.mrb[0].mxu0
    %v145 = vadd.f32 0.0, %v144
    %v146 = vpop.f32.mrb[0].mxu0
    %147 = vmatprep.mubr.f32.mxu0 0.0
    %148 = vmatmul.mubr.f32.gmra.mrb[0].mxu0 %v64
    %v149 = vpop.f32.mrb[0].mxu0
    %v150 = vadd.f32 0.0, %v149
    %v151 = vpop.f32.mrb[0].mxu0
    %152 = vmatprep.mubr.f32.mxu0 0.0
    %153 = vmatmul.mubr.f32.gmra.mrb[0].mxu0 %v67
    %v154 = vpop.f32.mrb[0].mxu0
    %v155 = vadd.f32 0.0, %v154
    %v156 = vpop.f32.mrb[0].mxu0
    %157 = vmatprep.mubr.f32.mxu0 0.0
    %158 = vmatmul.mubr.f32.gmra.mrb[0].mxu0 %v70
    %v159 = vpop.f32.mrb[0].mxu0
    %v160 = vadd.f32 0.0, %v159
    %v161 = vpop.f32.mrb[0].mxu0
    %162 = vmatprep.mubr.f32.mxu0 0.0
    %163 = vmatmul.mubr.f32.gmra.mrb[0].mxu0 %v73
    %v164 = vpop.f32.mrb[0].mxu0
    %v165 = vadd.f32 0.0, %v164
    %v166 = vpop.f32.mrb[0].mxu0
    %167 = vmatprep.mubr.f32.mxu0 0.0
    %168 = vmatmul.mubr.f32.gmra.mrb[0].mxu0 %v76
    %v169 = vpop.f32.mrb[0].mxu0
    %v170 = vadd.f32 0.0, %v169
    %v171 = vpop.f32.mrb[0].mxu0
    %172 = vdwg.mxu0
    %v173 = vand.u32 2147483647, %v145
    %vm174 = vcmp.le.f32.partialorder %v173, 0.7853982
    %vm175 = vcmp.lt.s32.totalorder %v145, 0
    %v176 = vand.u32 %v145, 2139095040
    %v177 = vshrl.u32 %v176, 23
    %v178 = vsub.s32 %v177, 127
    %v179 = vand.u32 2147483647, %v145
    %v180 = vand.u32 %v179, 8388607
    %v181 = vor.u32 %v180, 8388608
    %v182 = vsub.s32 0, %v181
    %v183 = vadd.s32 %v178, 1
    %vm184 = vcmp.gt.s32.totalorder %v183, 0
    %v185 = vsel %vm184, %v183, 0
    %v186 = vshrl.u32 %v185, 5
    %v187 = vand.u32 %v185, 31
    %v188 = vsub.s32 32, %v187
    %v189 = vshrl.u32 683565275, %v188
    %v190 = vshll.u32 683565275, %v187
    %v191 = vshrl.u32 2475754826, %v188
    %v192 = vor.u32 %v190, %v191
    %v193 = vshll.u32 2475754826, %v187
    %v194 = vshrl.u32 2131351028, %v188
    %v195 = vor.u32 %v193, %v194
    %v196 = vshll.u32 2131351028, %v187
    %v197 = vshrl.u32 2102212464, %v188
    %v198 = vor.u32 %v196, %v197
    %v199 = vshll.u32 2102212464, %v187
    %v200 = vshrl.u32 920167782, %v188
    %v201 = vor.u32 %v199, %v200
    %v202 = vshll.u32 920167782, %v187
    %v203 = vshrl.u32 1326507024, %v188
    %v204 = vor.u32 %v202, %v203
    %vm205 = vcmp.lt.s32.totalorder %v186, 1
    %vm206 = vcmp.lt.s32.totalorder %v186, 2
    %vm207 = vcmp.lt.s32.totalorder %v186, 3
    %vm208 = vcmp.lt.s32.totalorder %v186, 4
    %v209 = vsel %vm205, %v189, %v192
    %v210 = vsel %vm208, %v198, 2102212464
    %v211 = vsel %vm207, %v195, %v210
    %v212 = vsel %vm206, %v209, %v211
    %v213 = vsel %vm205, %v192, %v195
    %v214 = vsel %vm208, %v201, 920167782
    %v215 = vsel %vm207, %v198, %v214
    %v216 = vsel %vm206, %v213, %v215
    %v217 = vsel %vm205, %v195, %v198
    %v218 = vsel %vm208, %v204, 1326507024
    %v219 = vsel %vm207, %v201, %v218
    %v220 = vsel %vm206, %v217, %v219
    %v221 = vshll.u32 %v181, 8
    %v222 = vmul.u32.u64.compose %v221, %v220
    %v223 = vextract.low.u32 %v222
    %v224 = vextract.high.u32 %v222
    %v225 = vmul.u32.u64.compose %v221, %v216
    %v226 = vextract.low.u32 %v225
    %v227 = vextract.high.u32 %v225
    %v228 = vmul.u32 %v221, %v212
    %v229 = vadd.s32 %v224, %v226
    %vm230 = vc.u32 %v224, %v226
    %v231 = vadd.s32 %v227, 1
    %v232 = vsel %vm230, %v231, %v227
    %v233 = vadd.s32 %v228, %v232
    %v234 = vadd.s32 %v233, 536870912
    %v235 = vshrl.u32 %v234, 30
    %v236 = vshll.u32 %v235, 30
    %v237 = vsub.s32 %v233, %v236
    %vm238 = vcmp.lt.s32.totalorder %v237, 0
    %v239 = vsub.s32 0, %v237
    %v240 = vsel %vm238, %v239, %v237
    %v241 = vclz %v240
    %v242 = vsub.s32 %v241, 2
    %vm243 = vcmp.gt.s32.totalorder 0, %v242
    %v244 = vsel %vm243, 0, %v242
    %v245 = vsub.s32 32, %v244
    %v246 = vshll.u32 %v237, %v244
    %v247 = vshrl.u32 %v229, %v245
    %v248 = vor.u32 %v246, %v247
    %v249 = vsub.s32 4294967266, %v244
    %v250 = vadd.s32 %v249, 127
    %v251 = vshll.u32 %v250, 23
    %v252 = vor.u32 4788187, %v251
    %v253 = vand.u32 2147483647, %v252
    %v255 = vcvt.s32.f32 %v248
    %v256 = vmul.f32 %v255, %v253
    %v257 = vxor.u32 %v256, 2147483648
    %v258 = vsel %vm175, %v257, %v256
    %v259 = vsub.s32 4, %v235
    %v260 = vsel %vm175, %v259, %v235
    %v261 = vsel %vm174, %v145, %v258
    %v262 = vsel %vm174, 0, %v260
    %v263 = vcosq.f32.pop %v261
    %v264 = vsinq.f32.pop %v261
    %vm265 = vweird.f32 %v145
    %v266 = vand.u32 %v262, 3
    %vm267 = vcmp.lt.s32.totalorder %v266, 2
    %vm268 = vcmp.eq.s32.totalorder %v266, 0
    %v269 = vxor.u32 %v264, 2147483648
    %v270 = vsel %vm268, %v263, %v269
    %vm271 = vcmp.eq.s32.totalorder %v266, 2
    %v272 = vxor.u32 %v263, 2147483648
    %v273 = vsel %vm271, %v272, %v264
    %v274 = vsel %vm267, %v270, %v273
    %v275 = vsel %vm265, nan, %v274
    %v276 = vand.u32 2147483647, %v150
    %vm277 = vcmp.le.f32.partialorder %v276, 0.7853982
    %vm278 = vcmp.lt.s32.totalorder %v150, 0
    %v279 = vand.u32 %v150, 2139095040
    %v280 = vshrl.u32 %v279, 23
    %v281 = vsub.s32 %v280, 127
    %v282 = vand.u32 2147483647, %v150
    %v283 = vand.u32 %v282, 8388607
    %v284 = vor.u32 %v283, 8388608
    %v285 = vsub.s32 0, %v284
    %v286 = vadd.s32 %v281, 1
    %vm287 = vcmp.gt.s32.totalorder %v286, 0
    %v288 = vsel %vm287, %v286, 0
    %v289 = vshrl.u32 %v288, 5
    %v290 = vand.u32 %v288, 31
    %v291 = vsub.s32 32, %v290
    %v292 = vshrl.u32 683565275, %v291
    %v293 = vshll.u32 683565275, %v290
    %v294 = vshrl.u32 2475754826, %v291
    %v295 = vor.u32 %v293, %v294
    %v296 = vshll.u32 2475754826, %v290
    %v297 = vshrl.u32 2131351028, %v291
    %v298 = vor.u32 %v296, %v297
    %v299 = vshll.u32 2131351028, %v290
    %v300 = vshrl.u32 2102212464, %v291
    %v301 = vor.u32 %v299, %v300
    %v302 = vshll.u32 2102212464, %v290
    %v303 = vshrl.u32 920167782, %v291
    %v304 = vor.u32 %v302, %v303
    %v305 = vshll.u32 920167782, %v290
    %v306 = vshrl.u32 1326507024, %v291
    %v307 = vor.u32 %v305, %v306
    %vm308 = vcmp.lt.s32.totalorder %v289, 1
    %vm309 = vcmp.lt.s32.totalorder %v289, 2
    %vm310 = vcmp.lt.s32.totalorder %v289, 3
    %vm311 = vcmp.lt.s32.totalorder %v289, 4
    %v312 = vsel %vm308, %v292, %v295
    %v313 = vsel %vm311, %v301, 2102212464
    %v314 = vsel %vm310, %v298, %v313
    %v315 = vsel %vm309, %v312, %v314
    %v316 = vsel %vm308, %v295, %v298
    %v317 = vsel %vm311, %v304, 920167782
    %v318 = vsel %vm310, %v301, %v317
    %v319 = vsel %vm309, %v316, %v318
    %v320 = vsel %vm308, %v298, %v301
    %v321 = vsel %vm311, %v307, 1326507024
    %v322 = vsel %vm310, %v304, %v321
    %v323 = vsel %vm309, %v320, %v322
    %v324 = vshll.u32 %v284, 8
    %v325 = vmul.u32.u64.compose %v324, %v323
    %v326 = vextract.low.u32 %v325
    %v327 = vextract.high.u32 %v325
    %v328 = vmul.u32.u64.compose %v324, %v319
    %v329 = vextract.low.u32 %v328
    %v330 = vextract.high.u32 %v328
    %v331 = vmul.u32 %v324, %v315
    %v332 = vadd.s32 %v327, %v329
    %vm333 = vc.u32 %v327, %v329
    %v334 = vadd.s32 %v330, 1
    %v335 = vsel %vm333, %v334, %v330
    %v336 = vadd.s32 %v331, %v335
    %v337 = vadd.s32 %v336, 536870912
    %v338 = vshrl.u32 %v337, 30
    %v339 = vshll.u32 %v338, 30
    %v340 = vsub.s32 %v336, %v339
    %vm341 = vcmp.lt.s32.totalorder %v340, 0
    %v342 = vsub.s32 0, %v340
    %v343 = vsel %vm341, %v342, %v340
    %v344 = vclz %v343
    %v345 = vsub.s32 %v344, 2
    %vm346 = vcmp.gt.s32.totalorder 0, %v345
    %v347 = vsel %vm346, 0, %v345
    %v348 = vsub.s32 32, %v347
    %v349 = vshll.u32 %v340, %v347
    %v350 = vshrl.u32 %v332, %v348
    %v351 = vor.u32 %v349, %v350
    %v352 = vsub.s32 4294967266, %v347
    %v353 = vadd.s32 %v352, 127
    %v354 = vshll.u32 %v353, 23
    %v355 = vor.u32 4788187, %v354
    %v356 = vand.u32 2147483647, %v355
    %v358 = vcvt.s32.f32 %v351
    %v359 = vmul.f32 %v358, %v356
    %v360 = vxor.u32 %v359, 2147483648
    %v361 = vsel %vm278, %v360, %v359
    %v362 = vsub.s32 4, %v338
    %v363 = vsel %vm278, %v362, %v338
    %v364 = vsel %vm277, %v150, %v361
    %v365 = vsel %vm277, 0, %v363
    %v366 = vcosq.f32.pop %v364
    %v367 = vsinq.f32.pop %v364
    %vm368 = vweird.f32 %v150
    %v369 = vand.u32 %v365, 3
    %vm370 = vcmp.lt.s32.totalorder %v369, 2
    %vm371 = vcmp.eq.s32.totalorder %v369, 0
    %v372 = vxor.u32 %v367, 2147483648
    %v373 = vsel %vm371, %v366, %v372
    %vm374 = vcmp.eq.s32.totalorder %v369, 2
    %v375 = vxor.u32 %v366, 2147483648
    %v376 = vsel %vm374, %v375, %v367
    %v377 = vsel %vm370, %v373, %v376
    %v378 = vsel %vm368, nan, %v377
    %v379 = vand.u32 2147483647, %v155
    %vm380 = vcmp.le.f32.partialorder %v379, 0.7853982
    %vm381 = vcmp.lt.s32.totalorder %v155, 0
    %v382 = vand.u32 %v155, 2139095040
    %v383 = vshrl.u32 %v382, 23
    %v384 = vsub.s32 %v383, 127
    %v385 = vand.u32 2147483647, %v155
    %v386 = vand.u32 %v385, 8388607
    %v387 = vor.u32 %v386, 8388608
    %v388 = vsub.s32 0, %v387
    %v389 = vadd.s32 %v384, 1
    %vm390 = vcmp.gt.s32.totalorder %v389, 0
    %v391 = vsel %vm390, %v389, 0
    %v392 = vshrl.u32 %v391, 5
    %v393 = vand.u32 %v391, 31
    %v394 = vsub.s32 32, %v393
    %v395 = vshrl.u32 683565275, %v394
    %v396 = vshll.u32 683565275, %v393
    %v397 = vshrl.u32 2475754826, %v394
    %v398 = vor.u32 %v396, %v397
    %v399 = vshll.u32 2475754826, %v393
    %v400 = vshrl.u32 2131351028, %v394
    %v401 = vor.u32 %v399, %v400
    %v402 = vshll.u32 2131351028, %v393
    %v403 = vshrl.u32 2102212464, %v394
    %v404 = vor.u32 %v402, %v403
    %v405 = vshll.u32 2102212464, %v393
    %v406 = vshrl.u32 920167782, %v394
    %v407 = vor.u32 %v405, %v406
    %v408 = vshll.u32 920167782, %v393
    %v409 = vshrl.u32 1326507024, %v394
    %v410 = vor.u32 %v408, %v409
    %vm411 = vcmp.lt.s32.totalorder %v392, 1
    %vm412 = vcmp.lt.s32.totalorder %v392, 2
    %vm413 = vcmp.lt.s32.totalorder %v392, 3
    %vm414 = vcmp.lt.s32.totalorder %v392, 4
    %v415 = vsel %vm411, %v395, %v398
    %v416 = vsel %vm414, %v404, 2102212464
    %v417 = vsel %vm413, %v401, %v416
    %v418 = vsel %vm412, %v415, %v417
    %v419 = vsel %vm411, %v398, %v401
    %v420 = vsel %vm414, %v407, 920167782
    %v421 = vsel %vm413, %v404, %v420
    %v422 = vsel %vm412, %v419, %v421
    %v423 = vsel %vm411, %v401, %v404
    %v424 = vsel %vm414, %v410, 1326507024
    %v425 = vsel %vm413, %v407, %v424
    %v426 = vsel %vm412, %v423, %v425
    %v427 = vshll.u32 %v387, 8
    %v428 = vmul.u32.u64.compose %v427, %v426
    %v429 = vextract.low.u32 %v428
    %v430 = vextract.high.u32 %v428
    %v431 = vmul.u32.u64.compose %v427, %v422
    %v432 = vextract.low.u32 %v431
    %v433 = vextract.high.u32 %v431
    %v434 = vmul.u32 %v427, %v418
    %v435 = vadd.s32 %v430, %v432
    %vm436 = vc.u32 %v430, %v432
    %v437 = vadd.s32 %v433, 1
    %v438 = vsel %vm436, %v437, %v433
    %v439 = vadd.s32 %v434, %v438
    %v440 = vadd.s32 %v439, 536870912
    %v441 = vshrl.u32 %v440, 30
    %v442 = vshll.u32 %v441, 30
    %v443 = vsub.s32 %v439, %v442
    %vm444 = vcmp.lt.s32.totalorder %v443, 0
    %v445 = vsub.s32 0, %v443
    %v446 = vsel %vm444, %v445, %v443
    %v447 = vclz %v446
    %v448 = vsub.s32 %v447, 2
    %vm449 = vcmp.gt.s32.totalorder 0, %v448
    %v450 = vsel %vm449, 0, %v448
    %v451 = vsub.s32 32, %v450
    %v452 = vshll.u32 %v443, %v450
    %v453 = vshrl.u32 %v435, %v451
    %v454 = vor.u32 %v452, %v453
    %v455 = vsub.s32 4294967266, %v450
    %v456 = vadd.s32 %v455, 127
    %v457 = vshll.u32 %v456, 23
    %v458 = vor.u32 4788187, %v457
    %v459 = vand.u32 2147483647, %v458
    %v461 = vcvt.s32.f32 %v454
    %v462 = vmul.f32 %v461, %v459
    %v463 = vxor.u32 %v462, 2147483648
    %v464 = vsel %vm381, %v463, %v462
    %v465 = vsub.s32 4, %v441
    %v466 = vsel %vm381, %v465, %v441
    %v467 = vsel %vm380, %v155, %v464
    %v468 = vsel %vm380, 0, %v466
    %v469 = vcosq.f32.pop %v467
    %v470 = vsinq.f32.pop %v467
    %vm471 = vweird.f32 %v155
    %v472 = vand.u32 %v468, 3
    %vm473 = vcmp.lt.s32.totalorder %v472, 2
    %vm474 = vcmp.eq.s32.totalorder %v472, 0
    %v475 = vxor.u32 %v470, 2147483648
    %v476 = vsel %vm474, %v469, %v475
    %vm477 = vcmp.eq.s32.totalorder %v472, 2
    %v478 = vxor.u32 %v469, 2147483648
    %v479 = vsel %vm477, %v478, %v470
    %v480 = vsel %vm473, %v476, %v479
    %v481 = vsel %vm471, nan, %v480
    %v482 = vand.u32 2147483647, %v160
    %vm483 = vcmp.le.f32.partialorder %v482, 0.7853982
    %vm484 = vcmp.lt.s32.totalorder %v160, 0
    %v485 = vand.u32 %v160, 2139095040
    %v486 = vshrl.u32 %v485, 23
    %v487 = vsub.s32 %v486, 127
    %v488 = vand.u32 2147483647, %v160
    %v489 = vand.u32 %v488, 8388607
    %v490 = vor.u32 %v489, 8388608
    %v491 = vsub.s32 0, %v490
    %v492 = vadd.s32 %v487, 1
    %vm493 = vcmp.gt.s32.totalorder %v492, 0
    %v494 = vsel %vm493, %v492, 0
    %v495 = vshrl.u32 %v494, 5
    %v496 = vand.u32 %v494, 31
    %v497 = vsub.s32 32, %v496
    %v498 = vshrl.u32 683565275, %v497
    %v499 = vshll.u32 683565275, %v496
    %v500 = vshrl.u32 2475754826, %v497
    %v501 = vor.u32 %v499, %v500
    %v502 = vshll.u32 2475754826, %v496
    %v503 = vshrl.u32 2131351028, %v497
    %v504 = vor.u32 %v502, %v503
    %v505 = vshll.u32 2131351028, %v496
    %v506 = vshrl.u32 2102212464, %v497
    %v507 = vor.u32 %v505, %v506
    %v508 = vshll.u32 2102212464, %v496
    %v509 = vshrl.u32 920167782, %v497
    %v510 = vor.u32 %v508, %v509
    %v511 = vshll.u32 920167782, %v496
    %v512 = vshrl.u32 1326507024, %v497
    %v513 = vor.u32 %v511, %v512
    %vm514 = vcmp.lt.s32.totalorder %v495, 1
    %vm515 = vcmp.lt.s32.totalorder %v495, 2
    %vm516 = vcmp.lt.s32.totalorder %v495, 3
    %vm517 = vcmp.lt.s32.totalorder %v495, 4
    %v518 = vsel %vm514, %v498, %v501
    %v519 = vsel %vm517, %v507, 2102212464
    %v520 = vsel %vm516, %v504, %v519
    %v521 = vsel %vm515, %v518, %v520
    %v522 = vsel %vm514, %v501, %v504
    %v523 = vsel %vm517, %v510, 920167782
    %v524 = vsel %vm516, %v507, %v523
    %v525 = vsel %vm515, %v522, %v524
    %v526 = vsel %vm514, %v504, %v507
    %v527 = vsel %vm517, %v513, 1326507024
    %v528 = vsel %vm516, %v510, %v527
    %v529 = vsel %vm515, %v526, %v528
    %v530 = vshll.u32 %v490, 8
    %v531 = vmul.u32.u64.compose %v530, %v529
    %v532 = vextract.low.u32 %v531
    %v533 = vextract.high.u32 %v531
    %v534 = vmul.u32.u64.compose %v530, %v525
    %v535 = vextract.low.u32 %v534
    %v536 = vextract.high.u32 %v534
    %v537 = vmul.u32 %v530, %v521
    %v538 = vadd.s32 %v533, %v535
    %vm539 = vc.u32 %v533, %v535
    %v540 = vadd.s32 %v536, 1
    %v541 = vsel %vm539, %v540, %v536
    %v542 = vadd.s32 %v537, %v541
    %v543 = vadd.s32 %v542, 536870912
    %v544 = vshrl.u32 %v543, 30
    %v545 = vshll.u32 %v544, 30
    %v546 = vsub.s32 %v542, %v545
    %vm547 = vcmp.lt.s32.totalorder %v546, 0
    %v548 = vsub.s32 0, %v546
    %v549 = vsel %vm547, %v548, %v546
    %v550 = vclz %v549
    %v551 = vsub.s32 %v550, 2
    %vm552 = vcmp.gt.s32.totalorder 0, %v551
    %v553 = vsel %vm552, 0, %v551
    %v554 = vsub.s32 32, %v553
    %v555 = vshll.u32 %v546, %v553
    %v556 = vshrl.u32 %v538, %v554
    %v557 = vor.u32 %v555, %v556
    %v558 = vsub.s32 4294967266, %v553
    %v559 = vadd.s32 %v558, 127
    %v560 = vshll.u32 %v559, 23
    %v561 = vor.u32 4788187, %v560
    %v562 = vand.u32 2147483647, %v561
    %v564 = vcvt.s32.f32 %v557
    %v565 = vmul.f32 %v564, %v562
    %v566 = vxor.u32 %v565, 2147483648
    %v567 = vsel %vm484, %v566, %v565
    %v568 = vsub.s32 4, %v544
    %v569 = vsel %vm484, %v568, %v544
    %v570 = vsel %vm483, %v160, %v567
    %v571 = vsel %vm483, 0, %v569
    %v572 = vcosq.f32.pop %v570
    %v573 = vsinq.f32.pop %v570
    %vm574 = vweird.f32 %v160
    %v575 = vand.u32 %v571, 3
    %vm576 = vcmp.lt.s32.totalorder %v575, 2
    %vm577 = vcmp.eq.s32.totalorder %v575, 0
    %v578 = vxor.u32 %v573, 2147483648
    %v579 = vsel %vm577, %v572, %v578
    %vm580 = vcmp.eq.s32.totalorder %v575, 2
    %v581 = vxor.u32 %v572, 2147483648
    %v582 = vsel %vm580, %v581, %v573
    %v583 = vsel %vm576, %v579, %v582
    %v584 = vsel %vm574, nan, %v583
    %v585 = vand.u32 2147483647, %v165
    %vm586 = vcmp.le.f32.partialorder %v585, 0.7853982
    %vm587 = vcmp.lt.s32.totalorder %v165, 0
    %v588 = vand.u32 %v165, 2139095040
    %v589 = vshrl.u32 %v588, 23
    %v590 = vsub.s32 %v589, 127
    %v591 = vand.u32 2147483647, %v165
    %v592 = vand.u32 %v591, 8388607
    %v593 = vor.u32 %v592, 8388608
    %v594 = vsub.s32 0, %v593
    %v595 = vadd.s32 %v590, 1
    %vm596 = vcmp.gt.s32.totalorder %v595, 0
    %v597 = vsel %vm596, %v595, 0
    %v598 = vshrl.u32 %v597, 5
    %v599 = vand.u32 %v597, 31
    %v600 = vsub.s32 32, %v599
    %v601 = vshrl.u32 683565275, %v600
    %v602 = vshll.u32 683565275, %v599
    %v603 = vshrl.u32 2475754826, %v600
    %v604 = vor.u32 %v602, %v603
    %v605 = vshll.u32 2475754826, %v599
    %v606 = vshrl.u32 2131351028, %v600
    %v607 = vor.u32 %v605, %v606
    %v608 = vshll.u32 2131351028, %v599
    %v609 = vshrl.u32 2102212464, %v600
    %v610 = vor.u32 %v608, %v609
    %v611 = vshll.u32 2102212464, %v599
    %v612 = vshrl.u32 920167782, %v600
    %v613 = vor.u32 %v611, %v612
    %v614 = vshll.u32 920167782, %v599
    %v615 = vshrl.u32 1326507024, %v600
    %v616 = vor.u32 %v614, %v615
    %vm617 = vcmp.lt.s32.totalorder %v598, 1
    %vm618 = vcmp.lt.s32.totalorder %v598, 2
    %vm619 = vcmp.lt.s32.totalorder %v598, 3
    %vm620 = vcmp.lt.s32.totalorder %v598, 4
    %v621 = vsel %vm617, %v601, %v604
    %v622 = vsel %vm620, %v610, 2102212464
    %v623 = vsel %vm619, %v607, %v622
    %v624 = vsel %vm618, %v621, %v623
    %v625 = vsel %vm617, %v604, %v607
    %v626 = vsel %vm620, %v613, 920167782
    %v627 = vsel %vm619, %v610, %v626
    %v628 = vsel %vm618, %v625, %v627
    %v629 = vsel %vm617, %v607, %v610
    %v630 = vsel %vm620, %v616, 1326507024
    %v631 = vsel %vm619, %v613, %v630
    %v632 = vsel %vm618, %v629, %v631
    %v633 = vshll.u32 %v593, 8
    %v634 = vmul.u32.u64.compose %v633, %v632
    %v635 = vextract.low.u32 %v634
    %v636 = vextract.high.u32 %v634
    %v637 = vmul.u32.u64.compose %v633, %v628
    %v638 = vextract.low.u32 %v637
    %v639 = vextract.high.u32 %v637
    %v640 = vmul.u32 %v633, %v624
    %v641 = vadd.s32 %v636, %v638
    %vm642 = vc.u32 %v636, %v638
    %v643 = vadd.s32 %v639, 1
    %v644 = vsel %vm642, %v643, %v639
    %v645 = vadd.s32 %v640, %v644
    %v646 = vadd.s32 %v645, 536870912
    %v647 = vshrl.u32 %v646, 30
    %v648 = vshll.u32 %v647, 30
    %v649 = vsub.s32 %v645, %v648
    %vm650 = vcmp.lt.s32.totalorder %v649, 0
    %v651 = vsub.s32 0, %v649
    %v652 = vsel %vm650, %v651, %v649
    %v653 = vclz %v652
    %v654 = vsub.s32 %v653, 2
    %vm655 = vcmp.gt.s32.totalorder 0, %v654
    %v656 = vsel %vm655, 0, %v654
    %v657 = vsub.s32 32, %v656
    %v658 = vshll.u32 %v649, %v656
    %v659 = vshrl.u32 %v641, %v657
    %v660 = vor.u32 %v658, %v659
    %v661 = vsub.s32 4294967266, %v656
    %v662 = vadd.s32 %v661, 127
    %v663 = vshll.u32 %v662, 23
    %v664 = vor.u32 4788187, %v663
    %v665 = vand.u32 2147483647, %v664
    %v667 = vcvt.s32.f32 %v660
    %v668 = vmul.f32 %v667, %v665
    %v669 = vxor.u32 %v668, 2147483648
    %v670 = vsel %vm587, %v669, %v668
    %v671 = vsub.s32 4, %v647
    %v672 = vsel %vm587, %v671, %v647
    %v673 = vsel %vm586, %v165, %v670
    %v674 = vsel %vm586, 0, %v672
    %v675 = vcosq.f32.pop %v673
    %v676 = vsinq.f32.pop %v673
    %vm677 = vweird.f32 %v165
    %v678 = vand.u32 %v674, 3
    %vm679 = vcmp.lt.s32.totalorder %v678, 2
    %vm680 = vcmp.eq.s32.totalorder %v678, 0
    %v681 = vxor.u32 %v676, 2147483648
    %v682 = vsel %vm680, %v675, %v681
    %vm683 = vcmp.eq.s32.totalorder %v678, 2
    %v684 = vxor.u32 %v675, 2147483648
    %v685 = vsel %vm683, %v684, %v676
    %v686 = vsel %vm679, %v682, %v685
    %v687 = vsel %vm677, nan, %v686
    %v688 = vand.u32 2147483647, %v170
    %vm689 = vcmp.le.f32.partialorder %v688, 0.7853982
    %vm690 = vcmp.lt.s32.totalorder %v170, 0
    %v691 = vand.u32 %v170, 2139095040
    %v692 = vshrl.u32 %v691, 23
    %v693 = vsub.s32 %v692, 127
    %v694 = vand.u32 2147483647, %v170
    %v695 = vand.u32 %v694, 8388607
    %v696 = vor.u32 %v695, 8388608
    %v697 = vsub.s32 0, %v696
    %v698 = vadd.s32 %v693, 1
    %vm699 = vcmp.gt.s32.totalorder %v698, 0
    %v700 = vsel %vm699, %v698, 0
    %v701 = vshrl.u32 %v700, 5
    %v702 = vand.u32 %v700, 31
    %v703 = vsub.s32 32, %v702
    %v704 = vshrl.u32 683565275, %v703
    %v705 = vshll.u32 683565275, %v702
    %v706 = vshrl.u32 2475754826, %v703
    %v707 = vor.u32 %v705, %v706
    %v708 = vshll.u32 2475754826, %v702
    %v709 = vshrl.u32 2131351028, %v703
    %v710 = vor.u32 %v708, %v709
    %v711 = vshll.u32 2131351028, %v702
    %v712 = vshrl.u32 2102212464, %v703
    %v713 = vor.u32 %v711, %v712
    %v714 = vshll.u32 2102212464, %v702
    %v715 = vshrl.u32 920167782, %v703
    %v716 = vor.u32 %v714, %v715
    %v717 = vshll.u32 920167782, %v702
    %v718 = vshrl.u32 1326507024, %v703
    %v719 = vor.u32 %v717, %v718
    %vm720 = vcmp.lt.s32.totalorder %v701, 1
    %vm721 = vcmp.lt.s32.totalorder %v701, 2
    %vm722 = vcmp.lt.s32.totalorder %v701, 3
    %vm723 = vcmp.lt.s32.totalorder %v701, 4
    %v724 = vsel %vm720, %v704, %v707
    %v725 = vsel %vm723, %v713, 2102212464
    %v726 = vsel %vm722, %v710, %v725
    %v727 = vsel %vm721, %v724, %v726
    %v728 = vsel %vm720, %v707, %v710
    %v729 = vsel %vm723, %v716, 920167782
    %v730 = vsel %vm722, %v713, %v729
    %v731 = vsel %vm721, %v728, %v730
    %v732 = vsel %vm720, %v710, %v713
    %v733 = vsel %vm723, %v719, 1326507024
    %v734 = vsel %vm722, %v716, %v733
    %v735 = vsel %vm721, %v732, %v734
    %v736 = vshll.u32 %v696, 8
    %v737 = vmul.u32.u64.compose %v736, %v735
    %v738 = vextract.low.u32 %v737
    %v739 = vextract.high.u32 %v737
    %v740 = vmul.u32.u64.compose %v736, %v731
    %v741 = vextract.low.u32 %v740
    %v742 = vextract.high.u32 %v740
    %v743 = vmul.u32 %v736, %v727
    %v744 = vadd.s32 %v739, %v741
    %vm745 = vc.u32 %v739, %v741
    %v746 = vadd.s32 %v742, 1
    %v747 = vsel %vm745, %v746, %v742
    %v748 = vadd.s32 %v743, %v747
    %v749 = vadd.s32 %v748, 536870912
    %v750 = vshrl.u32 %v749, 30
    %v751 = vshll.u32 %v750, 30
    %v752 = vsub.s32 %v748, %v751
    %vm753 = vcmp.lt.s32.totalorder %v752, 0
    %v754 = vsub.s32 0, %v752
    %v755 = vsel %vm753, %v754, %v752
    %v756 = vclz %v755
    %v757 = vsub.s32 %v756, 2
    %vm758 = vcmp.gt.s32.totalorder 0, %v757
    %v759 = vsel %vm758, 0, %v757
    %v760 = vsub.s32 32, %v759
    %v761 = vshll.u32 %v752, %v759
    %v762 = vshrl.u32 %v744, %v760
    %v763 = vor.u32 %v761, %v762
    %v764 = vsub.s32 4294967266, %v759
    %v765 = vadd.s32 %v764, 127
    %v766 = vshll.u32 %v765, 23
    %v767 = vor.u32 4788187, %v766
    %v768 = vand.u32 2147483647, %v767
    %v770 = vcvt.s32.f32 %v763
    %v771 = vmul.f32 %v770, %v768
    %v772 = vxor.u32 %v771, 2147483648
    %v773 = vsel %vm690, %v772, %v771
    %v774 = vsub.s32 4, %v750
    %v775 = vsel %vm690, %v774, %v750
    %v776 = vsel %vm689, %v170, %v773
    %v777 = vsel %vm689, 0, %v775
    %v778 = vcosq.f32.pop %v776
    %v779 = vsinq.f32.pop %v776
    %vm780 = vweird.f32 %v170
    %v781 = vand.u32 %v777, 3
    %vm782 = vcmp.lt.s32.totalorder %v781, 2
    %vm783 = vcmp.eq.s32.totalorder %v781, 0
    %v784 = vxor.u32 %v779, 2147483648
    %v785 = vsel %vm783, %v778, %v784
    %vm786 = vcmp.eq.s32.totalorder %v781, 2
    %v787 = vxor.u32 %v778, 2147483648
    %v788 = vsel %vm786, %v787, %v779
    %v789 = vsel %vm782, %v785, %v788
    %v790 = vsel %vm780, nan, %v789
    %v791 = vld [vmem:[%s2] sm:$0xff]
    %v792 = vld [vmem:[%s2 + $0x8] sm:$0xff]
    %v793 = vld [vmem:[%s2 + $0x10] sm:$0xff]
    %v794 = vld [vmem:[%s2 + $0x18] sm:$0xff]
    %v795 = vld [vmem:[%s2 + $0x20] sm:$0xff]
    %v796 = vld [vmem:[%s2 + $0x28] sm:$0xff]
    %v797 = vld [vmem:[%s2 + $0x30] sm:$0xff]
    %v798 = vld [vmem:[%s2 + $0x38] sm:$0xff]
    %v799 = vld [vmem:[%s2 + $0x40] sm:$0xff]
    %v800 = vld [vmem:[%s2 + $0x48] sm:$0xff]
    %v801 = vld [vmem:[%s2 + $0x50] sm:$0xff]
    %v802 = vld [vmem:[%s2 + $0x58] sm:$0xff]
    %v803 = vld [vmem:[%s3] sm:$0xff]
    %v804 = vld [vmem:[%s3 + $0x8] sm:$0xff]
    %v805 = vld [vmem:[%s3 + $0x10] sm:$0xff]
    %v806 = vld [vmem:[%s3 + $0x18] sm:$0xff]
    %v807 = vld [vmem:[%s3 + $0x20] sm:$0xff]
    %v808 = vld [vmem:[%s3 + $0x28] sm:$0xff]
    %v809 = vld [vmem:[%s3 + $0x30] sm:$0xff]
    %v810 = vld [vmem:[%s3 + $0x38] sm:$0xff]
    %v811 = vld [vmem:[%s3 + $0x40] sm:$0xff]
    %v812 = vld [vmem:[%s3 + $0x48] sm:$0xff]
    %v813 = vld [vmem:[%s3 + $0x50] sm:$0xff]
    %v814 = vld [vmem:[%s3 + $0x58] sm:$0xff]
    %v816 = vsel %vm59, %v803, 0
    %v819 = vsel %vm59, %v804, 0
    %v822 = vsel %vm59, %v805, 0
    %v825 = vsel %vm59, %v806, 0
    %v828 = vsel %vm59, %v807, 0
    %v831 = vsel %vm59, %v808, 0
    %v834 = vsel %vm59, %v809, 0
    %v837 = vsel %vm59, %v810, 0
    %v840 = vsel %vm59, %v811, 0
    %v843 = vsel %vm59, %v812, 0
    %v846 = vsel %vm59, %v813, 0
    %v849 = vsel %vm59, %v814, 0
    %851 = vmatprep.subr.mxu0 0.0
    %852 = vmatpush1.msra.mxu0 %v52
    %853 = vmatprep.subr.mxu0 0.0
    %854 = vmatpush1.msra.mxu0 0.0
    %855 = vmatprep.subr.mxu0 0.0
    %856 = vmatpush1.msra.mxu0 0.0
    %857 = vmatprep.subr.mxu0 0.0
    %858 = vmatpush1.msra.mxu0 0.0
    %859 = vmatprep.subr.mxu0 0.0
    %860 = vmatpush1.msra.mxu0 0.0
    %861 = vmatprep.subr.mxu0 0.0
    %862 = vmatpush1.msra.mxu0 0.0
    %863 = vmatprep.subr.mxu0 0.0
    %864 = vmatpush1.msra.mxu0 0.0
    %865 = vmatprep.subr.mxu0 0.0
    %866 = vmatpush1.msra.mxu0 0.0
    %867 = vmatprep.subr.mxu0 0.0
    %868 = vmatpush1.msra.mxu0 0.0
    %869 = vmatprep.subr.mxu0 0.0
    %870 = vmatpush1.msra.mxu0 0.0
    %871 = vmatprep.subr.mxu0 0.0
    %872 = vmatpush1.msra.mxu0 0.0
    %873 = vmatprep.subr.mxu0 0.0
    %874 = vmatpush1.msra.mxu0 0.0
    %875 = vmatprep.subr.mxu0 0.0
    %876 = vmatpush1.msra.mxu0 0.0
    %877 = vmatprep.subr.mxu0 0.0
    %878 = vmatpush1.msra.mxu0 0.0
    %879 = vmatprep.subr.mxu0 0.0
    %880 = vmatpush1.msra.mxu0 0.0
    %881 = vmatprep.subr.mxu0 0.0
    %882 = vmatpush1.msra.mxu0 0.0
    %883 = vmatprep.subr.mxu0 0.0
    %884 = vmatpush1.msra.mxu0 0.0
    %885 = vmatprep.subr.mxu0 0.0
    %886 = vmatpush1.msra.mxu0 0.0
    %887 = vmatprep.subr.mxu0 0.0
    %888 = vmatpush1.msra.mxu0 0.0
    %889 = vmatprep.subr.mxu0 0.0
    %890 = vmatpush1.msra.mxu0 0.0
    %891 = vmatprep.subr.mxu0 0.0
    %892 = vmatpush1.msra.mxu0 0.0
    %893 = vmatprep.subr.mxu0 0.0
    %894 = vmatpush1.msra.mxu0 0.0
    %895 = vmatprep.subr.mxu0 0.0
    %896 = vmatpush1.msra.mxu0 0.0
    %897 = vmatprep.subr.mxu0 0.0
    %898 = vmatpush1.msra.mxu0 0.0
    %899 = vmatprep.subr.mxu0 0.0
    %900 = vmatpush1.msra.mxu0 0.0
    %901 = vmatprep.subr.mxu0 0.0
    %902 = vmatpush1.msra.mxu0 0.0
    %903 = vmatprep.subr.mxu0 0.0
    %904 = vmatpush1.msra.mxu0 0.0
    %905 = vmatprep.subr.mxu0 0.0
    %906 = vmatpush1.msra.mxu0 0.0
    %907 = vmatprep.subr.mxu0 0.0
    %908 = vmatpush1.msra.mxu0 0.0
    %909 = vmatprep.subr.mxu0 0.0
    %910 = vmatpush1.msra.mxu0 0.0
    %911 = vmatprep.subr.mxu0 0.0
    %912 = vmatpush1.msra.mxu0 0.0
    %913 = vmatprep.subr.mxu0 0.0
    %914 = vmatpush1.msra.mxu0 0.0
    %915 = vmatprep.mubr.f32.mxu0 0.0
    %916 = vmatmul.mubr.f32.gmra.mrb[0].mxu0 %v816
    %v917 = vpop.f32.mrb[0].mxu0
    %v918 = vadd.f32 0.0, %v917
    %v919 = vpop.f32.mrb[0].mxu0
    %920 = vmatprep.mubr.f32.mxu0 0.0
    %921 = vmatmul.mubr.f32.gmra.mrb[0].mxu0 %v819
    %v922 = vpop.f32.mrb[0].mxu0
    %v923 = vadd.f32 0.0, %v922
    %v924 = vpop.f32.mrb[0].mxu0
    %925 = vmatprep.mubr.f32.mxu0 0.0
    %926 = vmatmul.mubr.f32.gmra.mrb[0].mxu0 %v822
    %v927 = vpop.f32.mrb[0].mxu0
    %v928 = vadd.f32 0.0, %v927
    %v929 = vpop.f32.mrb[0].mxu0
    %930 = vmatprep.mubr.f32.mxu0 0.0
    %931 = vmatmul.mubr.f32.gmra.mrb[0].mxu0 %v825
    %v932 = vpop.f32.mrb[0].mxu0
    %v933 = vadd.f32 0.0, %v932
    %v934 = vpop.f32.mrb[0].mxu0
    %935 = vmatprep.mubr.f32.mxu0 0.0
    %936 = vmatmul.mubr.f32.gmra.mrb[0].mxu0 %v828
    %v937 = vpop.f32.mrb[0].mxu0
    %v938 = vadd.f32 0.0, %v937
    %v939 = vpop.f32.mrb[0].mxu0
    %940 = vmatprep.mubr.f32.mxu0 0.0
    %941 = vmatmul.mubr.f32.gmra.mrb[0].mxu0 %v831
    %v942 = vpop.f32.mrb[0].mxu0
    %v943 = vadd.f32 0.0, %v942
    %v944 = vpop.f32.mrb[0].mxu0
    %945 = vmatprep.mubr.f32.mxu0 0.0
    %946 = vmatmul.mubr.f32.gmra.mrb[0].mxu0 %v834
    %v947 = vpop.f32.mrb[0].mxu0
    %v948 = vadd.f32 0.0, %v947
    %v949 = vpop.f32.mrb[0].mxu0
    %950 = vmatprep.mubr.f32.mxu0 0.0
    %951 = vmatmul.mubr.f32.gmra.mrb[0].mxu0 %v837
    %v952 = vpop.f32.mrb[0].mxu0
    %v953 = vadd.f32 0.0, %v952
    %v954 = vpop.f32.mrb[0].mxu0
    %955 = vmatprep.mubr.f32.mxu0 0.0
    %956 = vmatmul.mubr.f32.gmra.mrb[0].mxu0 %v840
    %v957 = vpop.f32.mrb[0].mxu0
    %v958 = vadd.f32 0.0, %v957
    %v959 = vpop.f32.mrb[0].mxu0
    %960 = vmatprep.mubr.f32.mxu0 0.0
    %961 = vmatmul.mubr.f32.gmra.mrb[0].mxu0 %v843
    %v962 = vpop.f32.mrb[0].mxu0
    %v963 = vadd.f32 0.0, %v962
    %v964 = vpop.f32.mrb[0].mxu0
    %965 = vmatprep.mubr.f32.mxu0 0.0
    %966 = vmatmul.mubr.f32.gmra.mrb[0].mxu0 %v846
    %v967 = vpop.f32.mrb[0].mxu0
    %v968 = vadd.f32 0.0, %v967
    %v969 = vpop.f32.mrb[0].mxu0
    %970 = vmatprep.mubr.f32.mxu0 0.0
    %971 = vmatmul.mubr.f32.gmra.mrb[0].mxu0 %v849
    %v972 = vpop.f32.mrb[0].mxu0
    %v973 = vadd.f32 0.0, %v972
    %v974 = vpop.f32.mrb[0].mxu0
    %975 = vdwg.mxu0
    %vm976 = vcmask 392192
    %v978 = vsel %vm976, %v791, 0
    %v981 = vsel %vm976, %v792, 0
    %v984 = vsel %vm976, %v793, 0
    %v987 = vsel %vm976, %v794, 0
    %v990 = vsel %vm976, %v795, 0
    %v993 = vsel %vm976, %v796, 0
    %v996 = vsel %vm976, %v797, 0
    %v999 = vsel %vm976, %v798, 0
    %v1002 = vsel %vm976, %v799, 0
    %v1005 = vsel %vm976, %v800, 0
    %v1008 = vsel %vm976, %v801, 0
    %v1011 = vsel %vm976, %v802, 0
    %1013 = vmatprep.subr.mxu0 0.0
    %1014 = vmatpush1.msra.mxu0 %v275
    %1015 = vmatprep.subr.mxu0 0.0
    %1016 = vmatpush1.msra.mxu0 %v378
    %1017 = vmatprep.subr.mxu0 0.0
    %1018 = vmatpush1.msra.mxu0 %v481
    %1019 = vmatprep.subr.mxu0 0.0
    %1020 = vmatpush1.msra.mxu0 %v584
    %1021 = vmatprep.subr.mxu0 0.0
    %1022 = vmatpush1.msra.mxu0 %v687
    %1023 = vmatprep.subr.mxu0 0.0
    %1024 = vmatpush1.msra.mxu0 %v790
    %1025 = vmatprep.subr.mxu0 0.0
    %1026 = vmatpush1.msra.mxu0 0.0
    %1027 = vmatprep.subr.mxu0 0.0
    %1028 = vmatpush1.msra.mxu0 0.0
    %1029 = vmatprep.subr.mxu0 0.0
    %1030 = vmatpush1.msra.mxu0 0.0
    %1031 = vmatprep.subr.mxu0 0.0
    %1032 = vmatpush1.msra.mxu0 0.0
    %1033 = vmatprep.subr.mxu0 0.0
    %1034 = vmatpush1.msra.mxu0 0.0
    %1035 = vmatprep.subr.mxu0 0.0
    %1036 = vmatpush1.msra.mxu0 0.0
    %1037 = vmatprep.subr.mxu0 0.0
    %1038 = vmatpush1.msra.mxu0 0.0
    %1039 = vmatprep.subr.mxu0 0.0
    %1040 = vmatpush1.msra.mxu0 0.0
    %1041 = vmatprep.subr.mxu0 0.0
    %1042 = vmatpush1.msra.mxu0 0.0
    %1043 = vmatprep.subr.mxu0 0.0
    %1044 = vmatpush1.msra.mxu0 0.0
    %1045 = vmatprep.subr.mxu0 0.0
    %1046 = vmatpush1.msra.mxu0 0.0
    %1047 = vmatprep.subr.mxu0 0.0
    %1048 = vmatpush1.msra.mxu0 0.0
    %1049 = vmatprep.subr.mxu0 0.0
    %1050 = vmatpush1.msra.mxu0 0.0
    %1051 = vmatprep.subr.mxu0 0.0
    %1052 = vmatpush1.msra.mxu0 0.0
    %1053 = vmatprep.subr.mxu0 0.0
    %1054 = vmatpush1.msra.mxu0 0.0
    %1055 = vmatprep.subr.mxu0 0.0
    %1056 = vmatpush1.msra.mxu0 0.0
    %1057 = vmatprep.subr.mxu0 0.0
    %1058 = vmatpush1.msra.mxu0 0.0
    %1059 = vmatprep.subr.mxu0 0.0
    %1060 = vmatpush1.msra.mxu0 0.0
    %1061 = vmatprep.subr.mxu0 0.0
    %1062 = vmatpush1.msra.mxu0 0.0
    %1063 = vmatprep.subr.mxu0 0.0
    %1064 = vmatpush1.msra.mxu0 0.0
    %1065 = vmatprep.subr.mxu0 0.0
    %1066 = vmatpush1.msra.mxu0 0.0
    %1067 = vmatprep.subr.mxu0 0.0
    %1068 = vmatpush1.msra.mxu0 0.0
    %1069 = vmatprep.subr.mxu0 0.0
    %1070 = vmatpush1.msra.mxu0 0.0
    %1071 = vmatprep.subr.mxu0 0.0
    %1072 = vmatpush1.msra.mxu0 0.0
    %1073 = vmatprep.subr.mxu0 0.0
    %1074 = vmatpush1.msra.mxu0 0.0
    %1075 = vmatprep.subr.mxu0 0.0
    %1076 = vmatpush1.msra.mxu0 0.0
    %1077 = vmatprep.mubr.f32.mxu0 0.0
    %1078 = vmatmul.mubr.f32.gmra.mrb[0].mxu0 %v978
    %v1079 = vpop.f32.mrb[0].mxu0
    %v1080 = vadd.f32 %v918, %v1079
    %v1081 = vpop.f32.mrb[0].mxu0
    %1082 = vmatprep.mubr.f32.mxu0 0.0
    %1083 = vmatmul.mubr.f32.gmra.mrb[0].mxu0 %v981
    %v1084 = vpop.f32.mrb[0].mxu0
    %v1085 = vadd.f32 %v923, %v1084
    %v1086 = vpop.f32.mrb[0].mxu0
    %1087 = vmatprep.mubr.f32.mxu0 0.0
    %1088 = vmatmul.mubr.f32.gmra.mrb[0].mxu0 %v984
    %v1089 = vpop.f32.mrb[0].mxu0
    %v1090 = vadd.f32 %v928, %v1089
    %v1091 = vpop.f32.mrb[0].mxu0
    %1092 = vmatprep.mubr.f32.mxu0 0.0
    %1093 = vmatmul.mubr.f32.gmra.mrb[0].mxu0 %v987
    %v1094 = vpop.f32.mrb[0].mxu0
    %v1095 = vadd.f32 %v933, %v1094
    %v1096 = vpop.f32.mrb[0].mxu0
    %1097 = vmatprep.mubr.f32.mxu0 0.0
    %1098 = vmatmul.mubr.f32.gmra.mrb[0].mxu0 %v990
    %v1099 = vpop.f32.mrb[0].mxu0
    %v1100 = vadd.f32 %v938, %v1099
    %v1101 = vpop.f32.mrb[0].mxu0
    %1102 = vmatprep.mubr.f32.mxu0 0.0
    %1103 = vmatmul.mubr.f32.gmra.mrb[0].mxu0 %v993
    %v1104 = vpop.f32.mrb[0].mxu0
    %v1105 = vadd.f32 %v943, %v1104
    %v1106 = vpop.f32.mrb[0].mxu0
    %1107 = vmatprep.mubr.f32.mxu0 0.0
    %1108 = vmatmul.mubr.f32.gmra.mrb[0].mxu0 %v996
    %v1109 = vpop.f32.mrb[0].mxu0
    %v1110 = vadd.f32 %v948, %v1109
    %v1111 = vpop.f32.mrb[0].mxu0
    %1112 = vmatprep.mubr.f32.mxu0 0.0
    %1113 = vmatmul.mubr.f32.gmra.mrb[0].mxu0 %v999
    %v1114 = vpop.f32.mrb[0].mxu0
    %v1115 = vadd.f32 %v953, %v1114
    %v1116 = vpop.f32.mrb[0].mxu0
    %1117 = vmatprep.mubr.f32.mxu0 0.0
    %1118 = vmatmul.mubr.f32.gmra.mrb[0].mxu0 %v1002
    %v1119 = vpop.f32.mrb[0].mxu0
    %v1120 = vadd.f32 %v958, %v1119
    %v1121 = vpop.f32.mrb[0].mxu0
    %1122 = vmatprep.mubr.f32.mxu0 0.0
    %1123 = vmatmul.mubr.f32.gmra.mrb[0].mxu0 %v1005
    %v1124 = vpop.f32.mrb[0].mxu0
    %v1125 = vadd.f32 %v963, %v1124
    %v1126 = vpop.f32.mrb[0].mxu0
    %1127 = vmatprep.mubr.f32.mxu0 0.0
    %1128 = vmatmul.mubr.f32.gmra.mrb[0].mxu0 %v1008
    %v1129 = vpop.f32.mrb[0].mxu0
    %v1130 = vadd.f32 %v968, %v1129
    %v1131 = vpop.f32.mrb[0].mxu0
    %1132 = vmatprep.mubr.f32.mxu0 0.0
    %1133 = vmatmul.mubr.f32.gmra.mrb[0].mxu0 %v1011
    %v1134 = vpop.f32.mrb[0].mxu0
    %v1135 = vadd.f32 %v973, %v1134
    %v1136 = vpop.f32.mrb[0].mxu0
    %1137 = vdwg.mxu0
    %1139 = vset.pattern.permute.xlu0 0
    %1140 = vperm.xlu0 %1139, %v36
    %v1141 = vpop.permute.xlu0 %1140
    %1144 = vset.pattern.permute.xlu0 0
    %1145 = vperm.xlu0 %1144, %v37
    %v1146 = vpop.permute.xlu0 %1145
    %1149 = vset.pattern.permute.xlu0 0
    %1150 = vperm.xlu0 %1149, %v38
    %v1151 = vpop.permute.xlu0 %1150
    %1154 = vset.pattern.permute.xlu0 0
    %1155 = vperm.xlu0 %1154, %v39
    %v1156 = vpop.permute.xlu0 %1155
    %1159 = vset.pattern.permute.xlu0 0
    %1160 = vperm.xlu0 %1159, %v40
    %v1161 = vpop.permute.xlu0 %1160
    %1164 = vset.pattern.permute.xlu0 0
    %1165 = vperm.xlu0 %1164, %v41
    %v1166 = vpop.permute.xlu0 %1165
    %1169 = vset.pattern.permute.xlu0 0
    %1170 = vperm.xlu0 %1169, %v42
    %v1171 = vpop.permute.xlu0 %1170
    %1174 = vset.pattern.permute.xlu0 0
    %1175 = vperm.xlu0 %1174, %v43
    %v1176 = vpop.permute.xlu0 %1175
    %1179 = vset.pattern.permute.xlu0 0
    %1180 = vperm.xlu0 %1179, %v44
    %v1181 = vpop.permute.xlu0 %1180
    %1184 = vset.pattern.permute.xlu0 0
    %1185 = vperm.xlu0 %1184, %v45
    %v1186 = vpop.permute.xlu0 %1185
    %1189 = vset.pattern.permute.xlu0 0
    %1190 = vperm.xlu0 %1189, %v46
    %v1191 = vpop.permute.xlu0 %1190
    %1194 = vset.pattern.permute.xlu0 0
    %1195 = vperm.xlu0 %1194, %v47
    %v1196 = vpop.permute.xlu0 %1195
    %v1198 = vadd.f32 %v1080, %v1141
    %v1199 = vadd.f32 %v1085, %v1146
    %v1200 = vadd.f32 %v1090, %v1151
    %v1201 = vadd.f32 %v1095, %v1156
    %v1202 = vadd.f32 %v1100, %v1161
    %v1203 = vadd.f32 %v1105, %v1166
    %v1204 = vadd.f32 %v1110, %v1171
    %v1205 = vadd.f32 %v1115, %v1176
    %v1206 = vadd.f32 %v1120, %v1181
    %v1207 = vadd.f32 %v1125, %v1186
    %v1208 = vadd.f32 %v1130, %v1191
    %v1209 = vadd.f32 %v1135, %v1196
    %v1210 = vld [vmem:[%s4] sm:$0xff]
    %v1211 = vld [vmem:[%s4 + $0x8] sm:$0xff]
    %v1212 = vld [vmem:[%s4 + $0x10] sm:$0xff]
    %v1213 = vld [vmem:[%s4 + $0x18] sm:$0xff]
    %v1214 = vld [vmem:[%s4 + $0x20] sm:$0xff]
    %v1215 = vld [vmem:[%s4 + $0x28] sm:$0xff]
    %v1216 = vld [vmem:[%s4 + $0x30] sm:$0xff]
    %v1217 = vld [vmem:[%s4 + $0x38] sm:$0xff]
    %v1218 = vld [vmem:[%s4 + $0x40] sm:$0xff]
    %v1219 = vld [vmem:[%s4 + $0x48] sm:$0xff]
    %v1220 = vld [vmem:[%s4 + $0x50] sm:$0xff]
    %v1221 = vld [vmem:[%s4 + $0x58] sm:$0xff]
    %vm1222 = vcmask 785408
    %v1224 = vsel %vm1222, %v1210, 0
    %v1227 = vsel %vm1222, %v1211, 0
    %v1230 = vsel %vm1222, %v1212, 0
    %v1233 = vsel %vm1222, %v1213, 0
    %v1236 = vsel %vm1222, %v1214, 0
    %v1239 = vsel %vm1222, %v1215, 0
    %v1242 = vsel %vm1222, %v1216, 0
    %v1245 = vsel %vm1222, %v1217, 0
    %v1248 = vsel %vm1222, %v1218, 0
    %v1251 = vsel %vm1222, %v1219, 0
    %v1254 = vsel %vm1222, %v1220, 0
    %v1257 = vsel %vm1222, %v1221, 0
    %1259 = vmatprep.subr.mxu0 0.0
    %1260 = vmatpush1.msra.mxu0 %v1198
    %1261 = vmatprep.subr.mxu0 0.0
    %1262 = vmatpush1.msra.mxu0 %v1199
    %1263 = vmatprep.subr.mxu0 0.0
    %1264 = vmatpush1.msra.mxu0 %v1200
    %1265 = vmatprep.subr.mxu0 0.0
    %1266 = vmatpush1.msra.mxu0 %v1201
    %1267 = vmatprep.subr.mxu0 0.0
    %1268 = vmatpush1.msra.mxu0 %v1202
    %1269 = vmatprep.subr.mxu0 0.0
    %1270 = vmatpush1.msra.mxu0 %v1203
    %1271 = vmatprep.subr.mxu0 0.0
    %1272 = vmatpush1.msra.mxu0 %v1204
    %1273 = vmatprep.subr.mxu0 0.0
    %1274 = vmatpush1.msra.mxu0 %v1205
    %1275 = vmatprep.subr.mxu0 0.0
    %1276 = vmatpush1.msra.mxu0 %v1206
    %1277 = vmatprep.subr.mxu0 0.0
    %1278 = vmatpush1.msra.mxu0 %v1207
    %1279 = vmatprep.subr.mxu0 0.0
    %1280 = vmatpush1.msra.mxu0 %v1208
    %1281 = vmatprep.subr.mxu0 0.0
    %1282 = vmatpush1.msra.mxu0 %v1209
    %1283 = vmatprep.subr.mxu0 0.0
    %1284 = vmatpush1.msra.mxu0 0.0
    %1285 = vmatprep.subr.mxu0 0.0
    %1286 = vmatpush1.msra.mxu0 0.0
    %1287 = vmatprep.subr.mxu0 0.0
    %1288 = vmatpush1.msra.mxu0 0.0
    %1289 = vmatprep.subr.mxu0 0.0
    %1290 = vmatpush1.msra.mxu0 0.0
    %1291 = vmatprep.subr.mxu0 0.0
    %1292 = vmatpush1.msra.mxu0 0.0
    %1293 = vmatprep.subr.mxu0 0.0
    %1294 = vmatpush1.msra.mxu0 0.0
    %1295 = vmatprep.subr.mxu0 0.0
    %1296 = vmatpush1.msra.mxu0 0.0
    %1297 = vmatprep.subr.mxu0 0.0
    %1298 = vmatpush1.msra.mxu0 0.0
    %1299 = vmatprep.subr.mxu0 0.0
    %1300 = vmatpush1.msra.mxu0 0.0
    %1301 = vmatprep.subr.mxu0 0.0
    %1302 = vmatpush1.msra.mxu0 0.0
    %1303 = vmatprep.subr.mxu0 0.0
    %1304 = vmatpush1.msra.mxu0 0.0
    %1305 = vmatprep.subr.mxu0 0.0
    %1306 = vmatpush1.msra.mxu0 0.0
    %1307 = vmatprep.subr.mxu0 0.0
    %1308 = vmatpush1.msra.mxu0 0.0
    %1309 = vmatprep.subr.mxu0 0.0
    %1310 = vmatpush1.msra.mxu0 0.0
    %1311 = vmatprep.subr.mxu0 0.0
    %1312 = vmatpush1.msra.mxu0 0.0
    %1313 = vmatprep.subr.mxu0 0.0
    %1314 = vmatpush1.msra.mxu0 0.0
    %1315 = vmatprep.subr.mxu0 0.0
    %1316 = vmatpush1.msra.mxu0 0.0
    %1317 = vmatprep.subr.mxu0 0.0
    %1318 = vmatpush1.msra.mxu0 0.0
    %1319 = vmatprep.subr.mxu0 0.0
    %1320 = vmatpush1.msra.mxu0 0.0
    %1321 = vmatprep.subr.mxu0 0.0
    %1322 = vmatpush1.msra.mxu0 0.0
    %1323 = vmatprep.mubr.f32.mxu0 0.0
    %1324 = vmatmul.mubr.f32.gmra.mrb[0].mxu0 %v1224
    %v1325 = vpop.f32.mrb[0].mxu0
    %v1326 = vadd.f32 0.0, %v1325
    %v1327 = vpop.f32.mrb[0].mxu0
    %1328 = vmatprep.mubr.f32.mxu0 0.0
    %1329 = vmatmul.mubr.f32.gmra.mrb[0].mxu0 %v1227
    %v1330 = vpop.f32.mrb[0].mxu0
    %v1331 = vadd.f32 0.0, %v1330
    %v1332 = vpop.f32.mrb[0].mxu0
    %1333 = vmatprep.mubr.f32.mxu0 0.0
    %1334 = vmatmul.mubr.f32.gmra.mrb[0].mxu0 %v1230
    %v1335 = vpop.f32.mrb[0].mxu0
    %v1336 = vadd.f32 0.0, %v1335
    %v1337 = vpop.f32.mrb[0].mxu0
    %1338 = vmatprep.mubr.f32.mxu0 0.0
    %1339 = vmatmul.mubr.f32.gmra.mrb[0].mxu0 %v1233
    %v1340 = vpop.f32.mrb[0].mxu0
    %v1341 = vadd.f32 0.0, %v1340
    %v1342 = vpop.f32.mrb[0].mxu0
    %1343 = vmatprep.mubr.f32.mxu0 0.0
    %1344 = vmatmul.mubr.f32.gmra.mrb[0].mxu0 %v1236
    %v1345 = vpop.f32.mrb[0].mxu0
    %v1346 = vadd.f32 0.0, %v1345
    %v1347 = vpop.f32.mrb[0].mxu0
    %1348 = vmatprep.mubr.f32.mxu0 0.0
    %1349 = vmatmul.mubr.f32.gmra.mrb[0].mxu0 %v1239
    %v1350 = vpop.f32.mrb[0].mxu0
    %v1351 = vadd.f32 0.0, %v1350
    %v1352 = vpop.f32.mrb[0].mxu0
    %1353 = vmatprep.mubr.f32.mxu0 0.0
    %1354 = vmatmul.mubr.f32.gmra.mrb[0].mxu0 %v1242
    %v1355 = vpop.f32.mrb[0].mxu0
    %v1356 = vadd.f32 0.0, %v1355
    %v1357 = vpop.f32.mrb[0].mxu0
    %1358 = vmatprep.mubr.f32.mxu0 0.0
    %1359 = vmatmul.mubr.f32.gmra.mrb[0].mxu0 %v1245
    %v1360 = vpop.f32.mrb[0].mxu0
    %v1361 = vadd.f32 0.0, %v1360
    %v1362 = vpop.f32.mrb[0].mxu0
    %1363 = vmatprep.mubr.f32.mxu0 0.0
    %1364 = vmatmul.mubr.f32.gmra.mrb[0].mxu0 %v1248
    %v1365 = vpop.f32.mrb[0].mxu0
    %v1366 = vadd.f32 0.0, %v1365
    %v1367 = vpop.f32.mrb[0].mxu0
    %1368 = vmatprep.mubr.f32.mxu0 0.0
    %1369 = vmatmul.mubr.f32.gmra.mrb[0].mxu0 %v1251
    %v1370 = vpop.f32.mrb[0].mxu0
    %v1371 = vadd.f32 0.0, %v1370
    %v1372 = vpop.f32.mrb[0].mxu0
    %1373 = vmatprep.mubr.f32.mxu0 0.0
    %1374 = vmatmul.mubr.f32.gmra.mrb[0].mxu0 %v1254
    %v1375 = vpop.f32.mrb[0].mxu0
    %v1376 = vadd.f32 0.0, %v1375
    %v1377 = vpop.f32.mrb[0].mxu0
    %1378 = vmatprep.mubr.f32.mxu0 0.0
    %1379 = vmatmul.mubr.f32.gmra.mrb[0].mxu0 %v1257
    %v1380 = vpop.f32.mrb[0].mxu0
    %v1381 = vadd.f32 0.0, %v1380
    %v1382 = vpop.f32.mrb[0].mxu0
    %1383 = vdwg.mxu0
    %v1384 = vmul.f32 %v1198, %v1198
    %v1385 = vmul.f32 %v1199, %v1199
    %v1386 = vmul.f32 %v1200, %v1200
    %v1387 = vmul.f32 %v1201, %v1201
    %v1388 = vmul.f32 %v1202, %v1202
    %v1389 = vmul.f32 %v1203, %v1203
    %v1390 = vmul.f32 %v1204, %v1204
    %v1391 = vmul.f32 %v1205, %v1205
    %v1392 = vmul.f32 %v1206, %v1206
    %v1393 = vmul.f32 %v1207, %v1207
    %v1394 = vmul.f32 %v1208, %v1208
    %v1395 = vmul.f32 %v1209, %v1209
    %1396 = vmatprep.subr.mxu0 0.0
    %1397 = vmatpush1.msra.mxu0 %v1384
    %1398 = vmatprep.subr.mxu0 0.0
    %1399 = vmatpush1.msra.mxu0 %v1385
    %1400 = vmatprep.subr.mxu0 0.0
    %1401 = vmatpush1.msra.mxu0 %v1386
    %1402 = vmatprep.subr.mxu0 0.0
    %1403 = vmatpush1.msra.mxu0 %v1387
    %1404 = vmatprep.subr.mxu0 0.0
    %1405 = vmatpush1.msra.mxu0 %v1388
    %1406 = vmatprep.subr.mxu0 0.0
    %1407 = vmatpush1.msra.mxu0 %v1389
    %1408 = vmatprep.subr.mxu0 0.0
    %1409 = vmatpush1.msra.mxu0 %v1390
    %1410 = vmatprep.subr.mxu0 0.0
    %1411 = vmatpush1.msra.mxu0 %v1391
    %1412 = vmatprep.subr.mxu0 0.0
    %1413 = vmatpush1.msra.mxu0 %v1392
    %1414 = vmatprep.subr.mxu0 0.0
    %1415 = vmatpush1.msra.mxu0 %v1393
    %1416 = vmatprep.subr.mxu0 0.0
    %1417 = vmatpush1.msra.mxu0 %v1394
    %1418 = vmatprep.subr.mxu0 0.0
    %1419 = vmatpush1.msra.mxu0 %v1395
    %1420 = vmatprep.subr.mxu0 0.0
    %1421 = vmatpush1.msra.mxu0 0.0
    %1422 = vmatprep.subr.mxu0 0.0
    %1423 = vmatpush1.msra.mxu0 0.0
    %1424 = vmatprep.subr.mxu0 0.0
    %1425 = vmatpush1.msra.mxu0 0.0
    %1426 = vmatprep.subr.mxu0 0.0
    %1427 = vmatpush1.msra.mxu0 0.0
    %1428 = vmatprep.subr.mxu0 0.0
    %1429 = vmatpush1.msra.mxu0 0.0
    %1430 = vmatprep.subr.mxu0 0.0
    %1431 = vmatpush1.msra.mxu0 0.0
    %1432 = vmatprep.subr.mxu0 0.0
    %1433 = vmatpush1.msra.mxu0 0.0
    %1434 = vmatprep.subr.mxu0 0.0
    %1435 = vmatpush1.msra.mxu0 0.0
    %1436 = vmatprep.subr.mxu0 0.0
    %1437 = vmatpush1.msra.mxu0 0.0
    %1438 = vmatprep.subr.mxu0 0.0
    %1439 = vmatpush1.msra.mxu0 0.0
    %1440 = vmatprep.subr.mxu0 0.0
    %1441 = vmatpush1.msra.mxu0 0.0
    %1442 = vmatprep.subr.mxu0 0.0
    %1443 = vmatpush1.msra.mxu0 0.0
    %1444 = vmatprep.subr.mxu0 0.0
    %1445 = vmatpush1.msra.mxu0 0.0
    %1446 = vmatprep.subr.mxu0 0.0
    %1447 = vmatpush1.msra.mxu0 0.0
    %1448 = vmatprep.subr.mxu0 0.0
    %1449 = vmatpush1.msra.mxu0 0.0
    %1450 = vmatprep.subr.mxu0 0.0
    %1451 = vmatpush1.msra.mxu0 0.0
    %1452 = vmatprep.subr.mxu0 0.0
    %1453 = vmatpush1.msra.mxu0 0.0
    %1454 = vmatprep.subr.mxu0 0.0
    %1455 = vmatpush1.msra.mxu0 0.0
    %1456 = vmatprep.subr.mxu0 0.0
    %1457 = vmatpush1.msra.mxu0 0.0
    %1458 = vmatprep.subr.mxu0 0.0
    %1459 = vmatpush1.msra.mxu0 0.0
    %1460 = vmatprep.mubr.f32.mxu0 0.0
    %1461 = vmatmul.mubr.f32.gmra.mrb[0].mxu0 %v1224
    %v1462 = vpop.f32.mrb[0].mxu0
    %v1463 = vadd.f32 0.0, %v1462
    %v1464 = vpop.f32.mrb[0].mxu0
    %1465 = vmatprep.mubr.f32.mxu0 0.0
    %1466 = vmatmul.mubr.f32.gmra.mrb[0].mxu0 %v1227
    %v1467 = vpop.f32.mrb[0].mxu0
    %v1468 = vadd.f32 0.0, %v1467
    %v1469 = vpop.f32.mrb[0].mxu0
    %1470 = vmatprep.mubr.f32.mxu0 0.0
    %1471 = vmatmul.mubr.f32.gmra.mrb[0].mxu0 %v1230
    %v1472 = vpop.f32.mrb[0].mxu0
    %v1473 = vadd.f32 0.0, %v1472
    %v1474 = vpop.f32.mrb[0].mxu0
    %1475 = vmatprep.mubr.f32.mxu0 0.0
    %1476 = vmatmul.mubr.f32.gmra.mrb[0].mxu0 %v1233
    %v1477 = vpop.f32.mrb[0].mxu0
    %v1478 = vadd.f32 0.0, %v1477
    %v1479 = vpop.f32.mrb[0].mxu0
    %1480 = vmatprep.mubr.f32.mxu0 0.0
    %1481 = vmatmul.mubr.f32.gmra.mrb[0].mxu0 %v1236
    %v1482 = vpop.f32.mrb[0].mxu0
    %v1483 = vadd.f32 0.0, %v1482
    %v1484 = vpop.f32.mrb[0].mxu0
    %1485 = vmatprep.mubr.f32.mxu0 0.0
    %1486 = vmatmul.mubr.f32.gmra.mrb[0].mxu0 %v1239
    %v1487 = vpop.f32.mrb[0].mxu0
    %v1488 = vadd.f32 0.0, %v1487
    %v1489 = vpop.f32.mrb[0].mxu0
    %1490 = vmatprep.mubr.f32.mxu0 0.0
    %1491 = vmatmul.mubr.f32.gmra.mrb[0].mxu0 %v1242
    %v1492 = vpop.f32.mrb[0].mxu0
    %v1493 = vadd.f32 0.0, %v1492
    %v1494 = vpop.f32.mrb[0].mxu0
    %1495 = vmatprep.mubr.f32.mxu0 0.0
    %1496 = vmatmul.mubr.f32.gmra.mrb[0].mxu0 %v1245
    %v1497 = vpop.f32.mrb[0].mxu0
    %v1498 = vadd.f32 0.0, %v1497
    %v1499 = vpop.f32.mrb[0].mxu0
    %1500 = vmatprep.mubr.f32.mxu0 0.0
    %1501 = vmatmul.mubr.f32.gmra.mrb[0].mxu0 %v1248
    %v1502 = vpop.f32.mrb[0].mxu0
    %v1503 = vadd.f32 0.0, %v1502
    %v1504 = vpop.f32.mrb[0].mxu0
    %1505 = vmatprep.mubr.f32.mxu0 0.0
    %1506 = vmatmul.mubr.f32.gmra.mrb[0].mxu0 %v1251
    %v1507 = vpop.f32.mrb[0].mxu0
    %v1508 = vadd.f32 0.0, %v1507
    %v1509 = vpop.f32.mrb[0].mxu0
    %1510 = vmatprep.mubr.f32.mxu0 0.0
    %1511 = vmatmul.mubr.f32.gmra.mrb[0].mxu0 %v1254
    %v1512 = vpop.f32.mrb[0].mxu0
    %v1513 = vadd.f32 0.0, %v1512
    %v1514 = vpop.f32.mrb[0].mxu0
    %1515 = vmatprep.mubr.f32.mxu0 0.0
    %1516 = vmatmul.mubr.f32.gmra.mrb[0].mxu0 %v1257
    %v1517 = vpop.f32.mrb[0].mxu0
    %v1518 = vadd.f32 0.0, %v1517
    %v1519 = vpop.f32.mrb[0].mxu0
    %1520 = vdwg.mxu0
    %v1521 = vmul.f32 %v1326, %v1326
    %v1522 = vmul.f32 %v1331, %v1331
    %v1523 = vmul.f32 %v1336, %v1336
    %v1524 = vmul.f32 %v1341, %v1341
    %v1525 = vmul.f32 %v1346, %v1346
    %v1526 = vmul.f32 %v1351, %v1351
    %v1527 = vmul.f32 %v1356, %v1356
    %v1528 = vmul.f32 %v1361, %v1361
    %v1529 = vmul.f32 %v1366, %v1366
    %v1530 = vmul.f32 %v1371, %v1371
    %v1531 = vmul.f32 %v1376, %v1376
    %v1532 = vmul.f32 %v1381, %v1381
    %v1533 = vsub.f32 %v1463, %v1521
    %v1534 = vsub.f32 %v1468, %v1522
    %v1535 = vsub.f32 %v1473, %v1523
    %v1536 = vsub.f32 %v1478, %v1524
    %v1537 = vsub.f32 %v1483, %v1525
    %v1538 = vsub.f32 %v1488, %v1526
    %v1539 = vsub.f32 %v1493, %v1527
    %v1540 = vsub.f32 %v1498, %v1528
    %v1541 = vsub.f32 %v1503, %v1529
    %v1542 = vsub.f32 %v1508, %v1530
    %v1543 = vsub.f32 %v1513, %v1531
    %v1544 = vsub.f32 %v1518, %v1532
    %v1545 = vsub.f32 %v1198, %v1326
    %v1546 = vsub.f32 %v1199, %v1331
    %v1547 = vsub.f32 %v1200, %v1336
    %v1548 = vsub.f32 %v1201, %v1341
    %v1549 = vsub.f32 %v1202, %v1346
    %v1550 = vsub.f32 %v1203, %v1351
    %v1551 = vsub.f32 %v1204, %v1356
    %v1552 = vsub.f32 %v1205, %v1361
    %v1553 = vsub.f32 %v1206, %v1366
    %v1554 = vsub.f32 %v1207, %v1371
    %v1555 = vsub.f32 %v1208, %v1376
    %v1556 = vsub.f32 %v1209, %v1381
    %v1557 = vadd.f32 %v1533, 1e-05
    %v1558 = vadd.f32 %v1534, 1e-05
    %v1559 = vadd.f32 %v1535, 1e-05
    %v1560 = vadd.f32 %v1536, 1e-05
    %v1561 = vadd.f32 %v1537, 1e-05
    %v1562 = vadd.f32 %v1538, 1e-05
    %v1563 = vadd.f32 %v1539, 1e-05
    %v1564 = vadd.f32 %v1540, 1e-05
    %v1565 = vadd.f32 %v1541, 1e-05
    %v1566 = vadd.f32 %v1542, 1e-05
    %v1567 = vadd.f32 %v1543, 1e-05
    %v1568 = vadd.f32 %v1544, 1e-05
    %v1569 = vrsqrt.pop %v1557
    %v1570 = vrsqrt.pop %v1558
    %v1571 = vrsqrt.pop %v1559
    %v1572 = vrsqrt.pop %v1560
    %v1573 = vrsqrt.pop %v1561
    %v1574 = vrsqrt.pop %v1562
    %v1575 = vrsqrt.pop %v1563
    %v1576 = vrsqrt.pop %v1564
    %v1577 = vrsqrt.pop %v1565
    %v1578 = vrsqrt.pop %v1566
    %v1579 = vrsqrt.pop %v1567
    %v1580 = vrsqrt.pop %v1568
    %v1581 = vmul.f32 %v1545, %v1569
    %v1582 = vmul.f32 %v1546, %v1570
    %v1583 = vmul.f32 %v1547, %v1571
    %v1584 = vmul.f32 %v1548, %v1572
    %v1585 = vmul.f32 %v1549, %v1573
    %v1586 = vmul.f32 %v1550, %v1574
    %v1587 = vmul.f32 %v1551, %v1575
    %v1588 = vmul.f32 %v1552, %v1576
    %v1589 = vmul.f32 %v1553, %v1577
    %v1590 = vmul.f32 %v1554, %v1578
    %v1591 = vmul.f32 %v1555, %v1579
    %v1592 = vmul.f32 %v1556, %v1580
    %1593 = vset.pattern.permute.xlu0 1
    %1594 = vperm.xlu0 %1593, %v36
    %v1595 = vpop.permute.xlu0 %1594
    %1597 = vset.pattern.permute.xlu0 1
    %1598 = vperm.xlu0 %1597, %v37
    %v1599 = vpop.permute.xlu0 %1598
    %1601 = vset.pattern.permute.xlu0 1
    %1602 = vperm.xlu0 %1601, %v38
    %v1603 = vpop.permute.xlu0 %1602
    %1605 = vset.pattern.permute.xlu0 1
    %1606 = vperm.xlu0 %1605, %v39
    %v1607 = vpop.permute.xlu0 %1606
    %1609 = vset.pattern.permute.xlu0 1
    %1610 = vperm.xlu0 %1609, %v40
    %v1611 = vpop.permute.xlu0 %1610
    %1613 = vset.pattern.permute.xlu0 1
    %1614 = vperm.xlu0 %1613, %v41
    %v1615 = vpop.permute.xlu0 %1614
    %1617 = vset.pattern.permute.xlu0 1
    %1618 = vperm.xlu0 %1617, %v42
    %v1619 = vpop.permute.xlu0 %1618
    %1621 = vset.pattern.permute.xlu0 1
    %1622 = vperm.xlu0 %1621, %v43
    %v1623 = vpop.permute.xlu0 %1622
    %1625 = vset.pattern.permute.xlu0 1
    %1626 = vperm.xlu0 %1625, %v44
    %v1627 = vpop.permute.xlu0 %1626
    %1629 = vset.pattern.permute.xlu0 1
    %1630 = vperm.xlu0 %1629, %v45
    %v1631 = vpop.permute.xlu0 %1630
    %1633 = vset.pattern.permute.xlu0 1
    %1634 = vperm.xlu0 %1633, %v46
    %v1635 = vpop.permute.xlu0 %1634
    %1637 = vset.pattern.permute.xlu0 1
    %1638 = vperm.xlu0 %1637, %v47
    %v1639 = vpop.permute.xlu0 %1638
    %v1641 = vmul.f32 %v1581, %v1595
    %v1642 = vmul.f32 %v1582, %v1599
    %v1643 = vmul.f32 %v1583, %v1603
    %v1644 = vmul.f32 %v1584, %v1607
    %v1645 = vmul.f32 %v1585, %v1611
    %v1646 = vmul.f32 %v1586, %v1615
    %v1647 = vmul.f32 %v1587, %v1619
    %v1648 = vmul.f32 %v1588, %v1623
    %v1649 = vmul.f32 %v1589, %v1627
    %v1650 = vmul.f32 %v1590, %v1631
    %v1651 = vmul.f32 %v1591, %v1635
    %v1652 = vmul.f32 %v1592, %v1639
    %1653 = vset.pattern.permute.xlu0 2
    %1654 = vperm.xlu0 %1653, %v36
    %v1655 = vpop.permute.xlu0 %1654
    %1657 = vset.pattern.permute.xlu0 2
    %1658 = vperm.xlu0 %1657, %v37
    %v1659 = vpop.permute.xlu0 %1658
    %1661 = vset.pattern.permute.xlu0 2
    %1662 = vperm.xlu0 %1661, %v38
    %v1663 = vpop.permute.xlu0 %1662
    %1665 = vset.pattern.permute.xlu0 2
    %1666 = vperm.xlu0 %1665, %v39
    %v1667 = vpop.permute.xlu0 %1666
    %1669 = vset.pattern.permute.xlu0 2
    %1670 = vperm.xlu0 %1669, %v40
    %v1671 = vpop.permute.xlu0 %1670
    %1673 = vset.pattern.permute.xlu0 2
    %1674 = vperm.xlu0 %1673, %v41
    %v1675 = vpop.permute.xlu0 %1674
    %1677 = vset.pattern.permute.xlu0 2
    %1678 = vperm.xlu0 %1677, %v42
    %v1679 = vpop.permute.xlu0 %1678
    %1681 = vset.pattern.permute.xlu0 2
    %1682 = vperm.xlu0 %1681, %v43
    %v1683 = vpop.permute.xlu0 %1682
    %1685 = vset.pattern.permute.xlu0 2
    %1686 = vperm.xlu0 %1685, %v44
    %v1687 = vpop.permute.xlu0 %1686
    %1689 = vset.pattern.permute.xlu0 2
    %1690 = vperm.xlu0 %1689, %v45
    %v1691 = vpop.permute.xlu0 %1690
    %1693 = vset.pattern.permute.xlu0 2
    %1694 = vperm.xlu0 %1693, %v46
    %v1695 = vpop.permute.xlu0 %1694
    %1697 = vset.pattern.permute.xlu0 2
    %1698 = vperm.xlu0 %1697, %v47
    %v1699 = vpop.permute.xlu0 %1698
    %v1701 = vadd.f32 %v1641, %v1655
    %v1702 = vadd.f32 %v1642, %v1659
    %v1703 = vadd.f32 %v1643, %v1663
    %v1704 = vadd.f32 %v1644, %v1667
    %v1705 = vadd.f32 %v1645, %v1671
    %v1706 = vadd.f32 %v1646, %v1675
    %v1707 = vadd.f32 %v1647, %v1679
    %v1708 = vadd.f32 %v1648, %v1683
    %v1709 = vadd.f32 %v1649, %v1687
    %v1710 = vadd.f32 %v1650, %v1691
    %v1711 = vadd.f32 %v1651, %v1695
    %v1712 = vadd.f32 %v1652, %v1699
    %v1713 = vmul.f32 %v1701, 0.5
    %v1714 = vmul.f32 %v1702, 0.5
    %v1715 = vmul.f32 %v1703, 0.5
    %v1716 = vmul.f32 %v1704, 0.5
    %v1717 = vmul.f32 %v1705, 0.5
    %v1718 = vmul.f32 %v1706, 0.5
    %v1719 = vmul.f32 %v1707, 0.5
    %v1720 = vmul.f32 %v1708, 0.5
    %v1721 = vmul.f32 %v1709, 0.5
    %v1722 = vmul.f32 %v1710, 0.5
    %v1723 = vmul.f32 %v1711, 0.5
    %v1724 = vmul.f32 %v1712, 0.5
    %v1725 = vmul.f32 %v1701, 0.70710677
    %v1726 = vmul.f32 %v1702, 0.70710677
    %v1727 = vmul.f32 %v1703, 0.70710677
    %v1728 = vmul.f32 %v1704, 0.70710677
    %v1729 = vmul.f32 %v1705, 0.70710677
    %v1730 = vmul.f32 %v1706, 0.70710677
    %v1731 = vmul.f32 %v1707, 0.70710677
    %v1732 = vmul.f32 %v1708, 0.70710677
    %v1733 = vmul.f32 %v1709, 0.70710677
    %v1734 = vmul.f32 %v1710, 0.70710677
    %v1735 = vmul.f32 %v1711, 0.70710677
    %v1736 = vmul.f32 %v1712, 0.70710677
    %v1737 = verf.f32.pop %v1725
    %v1738 = verf.f32.pop %v1726
    %v1739 = verf.f32.pop %v1727
    %v1740 = verf.f32.pop %v1728
    %v1741 = verf.f32.pop %v1729
    %v1742 = verf.f32.pop %v1730
    %v1743 = verf.f32.pop %v1731
    %v1744 = verf.f32.pop %v1732
    %v1745 = verf.f32.pop %v1733
    %v1746 = verf.f32.pop %v1734
    %v1747 = verf.f32.pop %v1735
    %v1748 = verf.f32.pop %v1736
    %v1749 = vadd.f32 %v1737, 1.0
    %v1750 = vadd.f32 %v1738, 1.0
    %v1751 = vadd.f32 %v1739, 1.0
    %v1752 = vadd.f32 %v1740, 1.0
    %v1753 = vadd.f32 %v1741, 1.0
    %v1754 = vadd.f32 %v1742, 1.0
    %v1755 = vadd.f32 %v1743, 1.0
    %v1756 = vadd.f32 %v1744, 1.0
    %v1757 = vadd.f32 %v1745, 1.0
    %v1758 = vadd.f32 %v1746, 1.0
    %v1759 = vadd.f32 %v1747, 1.0
    %v1760 = vadd.f32 %v1748, 1.0
    %v1761 = vmul.f32 %v1713, %v1749
    %v1762 = vmul.f32 %v1714, %v1750
    %v1763 = vmul.f32 %v1715, %v1751
    %v1764 = vmul.f32 %v1716, %v1752
    %v1765 = vmul.f32 %v1717, %v1753
    %v1766 = vmul.f32 %v1718, %v1754
    %v1767 = vmul.f32 %v1719, %v1755
    %v1768 = vmul.f32 %v1720, %v1756
    %v1769 = vmul.f32 %v1721, %v1757
    %v1770 = vmul.f32 %v1722, %v1758
    %v1771 = vmul.f32 %v1723, %v1759
    %v1772 = vmul.f32 %v1724, %v1760
    %v1773 = vld [vmem:[%s5] sm:$0xff]
    %v1774 = vld [vmem:[%s5 + $0x8] sm:$0xff]
    %v1775 = vld [vmem:[%s5 + $0x10] sm:$0xff]
    %v1776 = vld [vmem:[%s5 + $0x18] sm:$0xff]
    %1778 = vset.pattern.permute.xlu0 0
    %1779 = vperm.xlu0 %1778, %v48
    %v1780 = vpop.permute.xlu0 %1779
    %1783 = vset.pattern.permute.xlu0 0
    %1784 = vperm.xlu0 %1783, %v49
    %v1785 = vpop.permute.xlu0 %1784
    %1788 = vset.pattern.permute.xlu0 0
    %1789 = vperm.xlu0 %1788, %v50
    %v1790 = vpop.permute.xlu0 %1789
    %1793 = vset.pattern.permute.xlu0 0
    %1794 = vperm.xlu0 %1793, %v51
    %v1795 = vpop.permute.xlu0 %1794
    %v1798 = vsel %vm1222, %v1773, 0
    %v1801 = vsel %vm1222, %v1774, 0
    %v1804 = vsel %vm1222, %v1775, 0
    %v1807 = vsel %vm1222, %v1776, 0
    %1809 = vmatprep.subr.mxu0 0.0
    %1810 = vmatpush1.msra.mxu0 %v1761
    %1811 = vmatprep.subr.mxu0 0.0
    %1812 = vmatpush1.msra.mxu0 %v1762
    %1813 = vmatprep.subr.mxu0 0.0
    %1814 = vmatpush1.msra.mxu0 %v1763
    %1815 = vmatprep.subr.mxu0 0.0
    %1816 = vmatpush1.msra.mxu0 %v1764
    %1817 = vmatprep.subr.mxu0 0.0
    %1818 = vmatpush1.msra.mxu0 %v1765
    %1819 = vmatprep.subr.mxu0 0.0
    %1820 = vmatpush1.msra.mxu0 %v1766
    %1821 = vmatprep.subr.mxu0 0.0
    %1822 = vmatpush1.msra.mxu0 %v1767
    %1823 = vmatprep.subr.mxu0 0.0
    %1824 = vmatpush1.msra.mxu0 %v1768
    %1825 = vmatprep.subr.mxu0 0.0
    %1826 = vmatpush1.msra.mxu0 %v1769
    %1827 = vmatprep.subr.mxu0 0.0
    %1828 = vmatpush1.msra.mxu0 %v1770
    %1829 = vmatprep.subr.mxu0 0.0
    %1830 = vmatpush1.msra.mxu0 %v1771
    %1831 = vmatprep.subr.mxu0 0.0
    %1832 = vmatpush1.msra.mxu0 %v1772
    %1833 = vmatprep.subr.mxu0 0.0
    %1834 = vmatpush1.msra.mxu0 0.0
    %1835 = vmatprep.subr.mxu0 0.0
    %1836 = vmatpush1.msra.mxu0 0.0
    %1837 = vmatprep.subr.mxu0 0.0
    %1838 = vmatpush1.msra.mxu0 0.0
    %1839 = vmatprep.subr.mxu0 0.0
    %1840 = vmatpush1.msra.mxu0 0.0
    %1841 = vmatprep.subr.mxu0 0.0
    %1842 = vmatpush1.msra.mxu0 0.0
    %1843 = vmatprep.subr.mxu0 0.0
    %1844 = vmatpush1.msra.mxu0 0.0
    %1845 = vmatprep.subr.mxu0 0.0
    %1846 = vmatpush1.msra.mxu0 0.0
    %1847 = vmatprep.subr.mxu0 0.0
    %1848 = vmatpush1.msra.mxu0 0.0
    %1849 = vmatprep.subr.mxu0 0.0
    %1850 = vmatpush1.msra.mxu0 0.0
    %1851 = vmatprep.subr.mxu0 0.0
    %1852 = vmatpush1.msra.mxu0 0.0
    %1853 = vmatprep.subr.mxu0 0.0
    %1854 = vmatpush1.msra.mxu0 0.0
    %1855 = vmatprep.subr.mxu0 0.0
    %1856 = vmatpush1.msra.mxu0 0.0
    %1857 = vmatprep.subr.mxu0 0.0
    %1858 = vmatpush1.msra.mxu0 0.0
    %1859 = vmatprep.subr.mxu0 0.0
    %1860 = vmatpush1.msra.mxu0 0.0
    %1861 = vmatprep.subr.mxu0 0.0
    %1862 = vmatpush1.msra.mxu0 0.0
    %1863 = vmatprep.subr.mxu0 0.0
    %1864 = vmatpush1.msra.mxu0 0.0
    %1865 = vmatprep.subr.mxu0 0.0
    %1866 = vmatpush1.msra.mxu0 0.0
    %1867 = vmatprep.subr.mxu0 0.0
    %1868 = vmatpush1.msra.mxu0 0.0
    %1869 = vmatprep.subr.mxu0 0.0
    %1870 = vmatpush1.msra.mxu0 0.0
    %1871 = vmatprep.subr.mxu0 0.0
    %1872 = vmatpush1.msra.mxu0 0.0
    %1873 = vmatprep.mubr.f32.mxu0 0.0
    %1874 = vmatmul.mubr.f32.gmra.mrb[0].mxu0 %v1798
    %v1875 = vpop.f32.mrb[0].mxu0
    %v1876 = vadd.f32 %v1780, %v1875
    %v1877 = vpop.f32.mrb[0].mxu0
    %1878 = vmatprep.mubr.f32.mxu0 0.0
    %1879 = vmatmul.mubr.f32.gmra.mrb[0].mxu0 %v1801
    %v1880 = vpop.f32.mrb[0].mxu0
    %v1881 = vadd.f32 %v1785, %v1880
    %v1882 = vpop.f32.mrb[0].mxu0
    %1883 = vmatprep.mubr.f32.mxu0 0.0
    %1884 = vmatmul.mubr.f32.gmra.mrb[0].mxu0 %v1804
    %v1885 = vpop.f32.mrb[0].mxu0
    %v1886 = vadd.f32 %v1790, %v1885
    %v1887 = vpop.f32.mrb[0].mxu0
    %1888 = vmatprep.mubr.f32.mxu0 0.0
    %1889 = vmatmul.mubr.f32.gmra.mrb[0].mxu0 %v1807
    %v1890 = vpop.f32.mrb[0].mxu0
    %v1891 = vadd.f32 %v1795, %v1890
    %v1892 = vpop.f32.mrb[0].mxu0
    %1893 = vdwg.mxu0
    %v1894 = vld [vmem:[%s6] sm:$0xff]
    %v1895 = vld [vmem:[%s6 + $0x8] sm:$0xff]
    %v1896 = vld [vmem:[%s6 + $0x10] sm:$0xff]
    %v1897 = vld [vmem:[%s6 + $0x18] sm:$0xff]
    %vm1898 = vcmask 261120
    %v1900 = vsel %vm1898, %v1894, 0
    %v1903 = vsel %vm1898, %v1895, 0
    %v1906 = vsel %vm1898, %v1896, 0
    %v1909 = vsel %vm1898, %v1897, 0
    %1911 = vmatprep.subr.mxu0 0.0
    %1912 = vmatpush1.msra.mxu0 %v1876
    %1913 = vmatprep.subr.mxu0 0.0
    %1914 = vmatpush1.msra.mxu0 %v1881
    %1915 = vmatprep.subr.mxu0 0.0
    %1916 = vmatpush1.msra.mxu0 %v1886
    %1917 = vmatprep.subr.mxu0 0.0
    %1918 = vmatpush1.msra.mxu0 %v1891
    %1919 = vmatprep.subr.mxu0 0.0
    %1920 = vmatpush1.msra.mxu0 0.0
    %1921 = vmatprep.subr.mxu0 0.0
    %1922 = vmatpush1.msra.mxu0 0.0
    %1923 = vmatprep.subr.mxu0 0.0
    %1924 = vmatpush1.msra.mxu0 0.0
    %1925 = vmatprep.subr.mxu0 0.0
    %1926 = vmatpush1.msra.mxu0 0.0
    %1927 = vmatprep.subr.mxu0 0.0
    %1928 = vmatpush1.msra.mxu0 0.0
    %1929 = vmatprep.subr.mxu0 0.0
    %1930 = vmatpush1.msra.mxu0 0.0
    %1931 = vmatprep.subr.mxu0 0.0
    %1932 = vmatpush1.msra.mxu0 0.0
    %1933 = vmatprep.subr.mxu0 0.0
    %1934 = vmatpush1.msra.mxu0 0.0
    %1935 = vmatprep.subr.mxu0 0.0
    %1936 = vmatpush1.msra.mxu0 0.0
    %1937 = vmatprep.subr.mxu0 0.0
    %1938 = vmatpush1.msra.mxu0 0.0
    %1939 = vmatprep.subr.mxu0 0.0
    %1940 = vmatpush1.msra.mxu0 0.0
    %1941 = vmatprep.subr.mxu0 0.0
    %1942 = vmatpush1.msra.mxu0 0.0
    %1943 = vmatprep.subr.mxu0 0.0
    %1944 = vmatpush1.msra.mxu0 0.0
    %1945 = vmatprep.subr.mxu0 0.0
    %1946 = vmatpush1.msra.mxu0 0.0
    %1947 = vmatprep.subr.mxu0 0.0
    %1948 = vmatpush1.msra.mxu0 0.0
    %1949 = vmatprep.subr.mxu0 0.0
    %1950 = vmatpush1.msra.mxu0 0.0
    %1951 = vmatprep.subr.mxu0 0.0
    %1952 = vmatpush1.msra.mxu0 0.0
    %1953 = vmatprep.subr.mxu0 0.0
    %1954 = vmatpush1.msra.mxu0 0.0
    %1955 = vmatprep.subr.mxu0 0.0
    %1956 = vmatpush1.msra.mxu0 0.0
    %1957 = vmatprep.subr.mxu0 0.0
    %1958 = vmatpush1.msra.mxu0 0.0
    %1959 = vmatprep.subr.mxu0 0.0
    %1960 = vmatpush1.msra.mxu0 0.0
    %1961 = vmatprep.subr.mxu0 0.0
    %1962 = vmatpush1.msra.mxu0 0.0
    %1963 = vmatprep.subr.mxu0 0.0
    %1964 = vmatpush1.msra.mxu0 0.0
    %1965 = vmatprep.subr.mxu0 0.0
    %1966 = vmatpush1.msra.mxu0 0.0
    %1967 = vmatprep.subr.mxu0 0.0
    %1968 = vmatpush1.msra.mxu0 0.0
    %1969 = vmatprep.subr.mxu0 0.0
    %1970 = vmatpush1.msra.mxu0 0.0
    %1971 = vmatprep.subr.mxu0 0.0
    %1972 = vmatpush1.msra.mxu0 0.0
    %1973 = vmatprep.subr.mxu0 0.0
    %1974 = vmatpush1.msra.mxu0 0.0
    %1975 = vmatprep.mubr.f32.mxu0 0.0
    %1976 = vmatmul.mubr.f32.gmra.mrb[0].mxu0 %v1900
    %v1977 = vpop.f32.mrb[0].mxu0
    %v1978 = vadd.f32 0.0, %v1977
    %v1979 = vpop.f32.mrb[0].mxu0
    %1980 = vmatprep.mubr.f32.mxu0 0.0
    %1981 = vmatmul.mubr.f32.gmra.mrb[0].mxu0 %v1903
    %v1982 = vpop.f32.mrb[0].mxu0
    %v1983 = vadd.f32 0.0, %v1982
    %v1984 = vpop.f32.mrb[0].mxu0
    %1985 = vmatprep.mubr.f32.mxu0 0.0
    %1986 = vmatmul.mubr.f32.gmra.mrb[0].mxu0 %v1906
    %v1987 = vpop.f32.mrb[0].mxu0
    %v1988 = vadd.f32 0.0, %v1987
    %v1989 = vpop.f32.mrb[0].mxu0
    %1990 = vmatprep.mubr.f32.mxu0 0.0
    %1991 = vmatmul.mubr.f32.gmra.mrb[0].mxu0 %v1909
    %v1992 = vpop.f32.mrb[0].mxu0
    %v1993 = vadd.f32 0.0, %v1992
    %v1994 = vpop.f32.mrb[0].mxu0
    %1995 = vdwg.mxu0
    %v1996 = vmul.f32 %v1876, %v1876
    %v1997 = vmul.f32 %v1881, %v1881
    %v1998 = vmul.f32 %v1886, %v1886
    %v1999 = vmul.f32 %v1891, %v1891
    %2000 = vmatprep.subr.mxu0 0.0
    %2001 = vmatpush1.msra.mxu0 %v1996
    %2002 = vmatprep.subr.mxu0 0.0
    %2003 = vmatpush1.msra.mxu0 %v1997
    %2004 = vmatprep.subr.mxu0 0.0
    %2005 = vmatpush1.msra.mxu0 %v1998
    %2006 = vmatprep.subr.mxu0 0.0
    %2007 = vmatpush1.msra.mxu0 %v1999
    %2008 = vmatprep.subr.mxu0 0.0
    %2009 = vmatpush1.msra.mxu0 0.0
    %2010 = vmatprep.subr.mxu0 0.0
    %2011 = vmatpush1.msra.mxu0 0.0
    %2012 = vmatprep.subr.mxu0 0.0
    %2013 = vmatpush1.msra.mxu0 0.0
    %2014 = vmatprep.subr.mxu0 0.0
    %2015 = vmatpush1.msra.mxu0 0.0
    %2016 = vmatprep.subr.mxu0 0.0
    %2017 = vmatpush1.msra.mxu0 0.0
    %2018 = vmatprep.subr.mxu0 0.0
    %2019 = vmatpush1.msra.mxu0 0.0
    %2020 = vmatprep.subr.mxu0 0.0
    %2021 = vmatpush1.msra.mxu0 0.0
    %2022 = vmatprep.subr.mxu0 0.0
    %2023 = vmatpush1.msra.mxu0 0.0
    %2024 = vmatprep.subr.mxu0 0.0
    %2025 = vmatpush1.msra.mxu0 0.0
    %2026 = vmatprep.subr.mxu0 0.0
    %2027 = vmatpush1.msra.mxu0 0.0
    %2028 = vmatprep.subr.mxu0 0.0
    %2029 = vmatpush1.msra.mxu0 0.0
    %2030 = vmatprep.subr.mxu0 0.0
    %2031 = vmatpush1.msra.mxu0 0.0
    %2032 = vmatprep.subr.mxu0 0.0
    %2033 = vmatpush1.msra.mxu0 0.0
    %2034 = vmatprep.subr.mxu0 0.0
    %2035 = vmatpush1.msra.mxu0 0.0
    %2036 = vmatprep.subr.mxu0 0.0
    %2037 = vmatpush1.msra.mxu0 0.0
    %2038 = vmatprep.subr.mxu0 0.0
    %2039 = vmatpush1.msra.mxu0 0.0
    %2040 = vmatprep.subr.mxu0 0.0
    %2041 = vmatpush1.msra.mxu0 0.0
    %2042 = vmatprep.subr.mxu0 0.0
    %2043 = vmatpush1.msra.mxu0 0.0
    %2044 = vmatprep.subr.mxu0 0.0
    %2045 = vmatpush1.msra.mxu0 0.0
    %2046 = vmatprep.subr.mxu0 0.0
    %2047 = vmatpush1.msra.mxu0 0.0
    %2048 = vmatprep.subr.mxu0 0.0
    %2049 = vmatpush1.msra.mxu0 0.0
    %2050 = vmatprep.subr.mxu0 0.0
    %2051 = vmatpush1.msra.mxu0 0.0
    %2052 = vmatprep.subr.mxu0 0.0
    %2053 = vmatpush1.msra.mxu0 0.0
    %2054 = vmatprep.subr.mxu0 0.0
    %2055 = vmatpush1.msra.mxu0 0.0
    %2056 = vmatprep.subr.mxu0 0.0
    %2057 = vmatpush1.msra.mxu0 0.0
    %2058 = vmatprep.subr.mxu0 0.0
    %2059 = vmatpush1.msra.mxu0 0.0
    %2060 = vmatprep.subr.mxu0 0.0
    %2061 = vmatpush1.msra.mxu0 0.0
    %2062 = vmatprep.subr.mxu0 0.0
    %2063 = vmatpush1.msra.mxu0 0.0
    %2064 = vmatprep.mubr.f32.mxu0 0.0
    %2065 = vmatmul.mubr.f32.gmra.mrb[0].mxu0 %v1900
    %v2066 = vpop.f32.mrb[0].mxu0
    %v2067 = vadd.f32 0.0, %v2066
    %v2068 = vpop.f32.mrb[0].mxu0
    %2069 = vmatprep.mubr.f32.mxu0 0.0
    %2070 = vmatmul.mubr.f32.gmra.mrb[0].mxu0 %v1903
    %v2071 = vpop.f32.mrb[0].mxu0
    %v2072 = vadd.f32 0.0, %v2071
    %v2073 = vpop.f32.mrb[0].mxu0
    %2074 = vmatprep.mubr.f32.mxu0 0.0
    %2075 = vmatmul.mubr.f32.gmra.mrb[0].mxu0 %v1906
    %v2076 = vpop.f32.mrb[0].mxu0
    %v2077 = vadd.f32 0.0, %v2076
    %v2078 = vpop.f32.mrb[0].mxu0
    %2079 = vmatprep.mubr.f32.mxu0 0.0
    %2080 = vmatmul.mubr.f32.gmra.mrb[0].mxu0 %v1909
    %v2081 = vpop.f32.mrb[0].mxu0
    %v2082 = vadd.f32 0.0, %v2081
    %v2083 = vpop.f32.mrb[0].mxu0
    %2084 = vdwg.mxu0
    %v2085 = vmul.f32 %v1978, %v1978
    %v2086 = vmul.f32 %v1983, %v1983
    %v2087 = vmul.f32 %v1988, %v1988
    %v2088 = vmul.f32 %v1993, %v1993
    %v2089 = vsub.f32 %v2067, %v2085
    %v2090 = vsub.f32 %v2072, %v2086
    %v2091 = vsub.f32 %v2077, %v2087
    %v2092 = vsub.f32 %v2082, %v2088
    %v2093 = vsub.f32 %v1876, %v1978
    %v2094 = vsub.f32 %v1881, %v1983
    %v2095 = vsub.f32 %v1886, %v1988
    %v2096 = vsub.f32 %v1891, %v1993
    %v2097 = vadd.f32 %v2089, 1e-05
    %v2098 = vadd.f32 %v2090, 1e-05
    %v2099 = vadd.f32 %v2091, 1e-05
    %v2100 = vadd.f32 %v2092, 1e-05
    %v2101 = vrsqrt.pop %v2097
    %v2102 = vrsqrt.pop %v2098
    %v2103 = vrsqrt.pop %v2099
    %v2104 = vrsqrt.pop %v2100
    %v2105 = vmul.f32 %v2093, %v2101
    %v2106 = vmul.f32 %v2094, %v2102
    %v2107 = vmul.f32 %v2095, %v2103
    %v2108 = vmul.f32 %v2096, %v2104
    %2109 = vset.pattern.permute.xlu0 1
    %2110 = vperm.xlu0 %2109, %v48
    %v2111 = vpop.permute.xlu0 %2110
    %2113 = vset.pattern.permute.xlu0 1
    %2114 = vperm.xlu0 %2113, %v49
    %v2115 = vpop.permute.xlu0 %2114
    %2117 = vset.pattern.permute.xlu0 1
    %2118 = vperm.xlu0 %2117, %v50
    %v2119 = vpop.permute.xlu0 %2118
    %2121 = vset.pattern.permute.xlu0 1
    %2122 = vperm.xlu0 %2121, %v51
    %v2123 = vpop.permute.xlu0 %2122
    %v2125 = vmul.f32 %v2105, %v2111
    %v2126 = vmul.f32 %v2106, %v2115
    %v2127 = vmul.f32 %v2107, %v2119
    %v2128 = vmul.f32 %v2108, %v2123
    %2129 = vset.pattern.permute.xlu0 2
    %2130 = vperm.xlu0 %2129, %v48
    %v2131 = vpop.permute.xlu0 %2130
    %2133 = vset.pattern.permute.xlu0 2
    %2134 = vperm.xlu0 %2133, %v49
    %v2135 = vpop.permute.xlu0 %2134
    %2137 = vset.pattern.permute.xlu0 2
    %2138 = vperm.xlu0 %2137, %v50
    %v2139 = vpop.permute.xlu0 %2138
    %2141 = vset.pattern.permute.xlu0 2
    %2142 = vperm.xlu0 %2141, %v51
    %v2143 = vpop.permute.xlu0 %2142
    %v2145 = vadd.f32 %v2125, %v2131
    %v2146 = vadd.f32 %v2126, %v2135
    %v2147 = vadd.f32 %v2127, %v2139
    %v2148 = vadd.f32 %v2128, %v2143
    %v2149 = vmul.f32 %v2145, 0.5
    %v2150 = vmul.f32 %v2146, 0.5
    %v2151 = vmul.f32 %v2147, 0.5
    %v2152 = vmul.f32 %v2148, 0.5
    %v2153 = vmul.f32 %v2145, 0.70710677
    %v2154 = vmul.f32 %v2146, 0.70710677
    %v2155 = vmul.f32 %v2147, 0.70710677
    %v2156 = vmul.f32 %v2148, 0.70710677
    %v2157 = verf.f32.pop %v2153
    %v2158 = verf.f32.pop %v2154
    %v2159 = verf.f32.pop %v2155
    %v2160 = verf.f32.pop %v2156
    %v2161 = vadd.f32 %v2157, 1.0
    %v2162 = vadd.f32 %v2158, 1.0
    %v2163 = vadd.f32 %v2159, 1.0
    %v2164 = vadd.f32 %v2160, 1.0
    %v2165 = vmul.f32 %v2149, %v2161
    %v2166 = vmul.f32 %v2150, %v2162
    %v2167 = vmul.f32 %v2151, %v2163
    %v2168 = vmul.f32 %v2152, %v2164
    %v2169 = vld [vmem:[%s7] sm:$0xff]
    %v2170 = vld [vmem:[%s7 + $0x8] sm:$0xff]
    %v2171 = vld [vmem:[%s7 + $0x10] sm:$0xff]
    %v2172 = vld [vmem:[%s7 + $0x18] sm:$0xff]
    %2173 = vset.pattern.permute.xlu0 3
    %2174 = vperm.xlu0 %2173, %v48
    %v2175 = vpop.permute.xlu0 %2174
    %2177 = vset.pattern.permute.xlu0 3
    %2178 = vperm.xlu0 %2177, %v49
    %v2179 = vpop.permute.xlu0 %2178
    %2181 = vset.pattern.permute.xlu0 3
    %2182 = vperm.xlu0 %2181, %v50
    %v2183 = vpop.permute.xlu0 %2182
    %2185 = vset.pattern.permute.xlu0 3
    %2186 = vperm.xlu0 %2185, %v51
    %v2187 = vpop.permute.xlu0 %2186
    %v2190 = vsel %vm1898, %v2169, 0
    %v2193 = vsel %vm1898, %v2170, 0
    %v2196 = vsel %vm1898, %v2171, 0
    %v2199 = vsel %vm1898, %v2172, 0
    %2201 = vmatprep.subr.mxu0 0.0
    %2202 = vmatpush1.msra.mxu0 %v2165
    %2203 = vmatprep.subr.mxu0 0.0
    %2204 = vmatpush1.msra.mxu0 %v2166
    %2205 = vmatprep.subr.mxu0 0.0
    %2206 = vmatpush1.msra.mxu0 %v2167
    %2207 = vmatprep.subr.mxu0 0.0
    %2208 = vmatpush1.msra.mxu0 %v2168
    %2209 = vmatprep.subr.mxu0 0.0
    %2210 = vmatpush1.msra.mxu0 0.0
    %2211 = vmatprep.subr.mxu0 0.0
    %2212 = vmatpush1.msra.mxu0 0.0
    %2213 = vmatprep.subr.mxu0 0.0
    %2214 = vmatpush1.msra.mxu0 0.0
    %2215 = vmatprep.subr.mxu0 0.0
    %2216 = vmatpush1.msra.mxu0 0.0
    %2217 = vmatprep.subr.mxu0 0.0
    %2218 = vmatpush1.msra.mxu0 0.0
    %2219 = vmatprep.subr.mxu0 0.0
    %2220 = vmatpush1.msra.mxu0 0.0
    %2221 = vmatprep.subr.mxu0 0.0
    %2222 = vmatpush1.msra.mxu0 0.0
    %2223 = vmatprep.subr.mxu0 0.0
    %2224 = vmatpush1.msra.mxu0 0.0
    %2225 = vmatprep.subr.mxu0 0.0
    %2226 = vmatpush1.msra.mxu0 0.0
    %2227 = vmatprep.subr.mxu0 0.0
    %2228 = vmatpush1.msra.mxu0 0.0
    %2229 = vmatprep.subr.mxu0 0.0
    %2230 = vmatpush1.msra.mxu0 0.0
    %2231 = vmatprep.subr.mxu0 0.0
    %2232 = vmatpush1.msra.mxu0 0.0
    %2233 = vmatprep.subr.mxu0 0.0
    %2234 = vmatpush1.msra.mxu0 0.0
    %2235 = vmatprep.subr.mxu0 0.0
    %2236 = vmatpush1.msra.mxu0 0.0
    %2237 = vmatprep.subr.mxu0 0.0
    %2238 = vmatpush1.msra.mxu0 0.0
    %2239 = vmatprep.subr.mxu0 0.0
    %2240 = vmatpush1.msra.mxu0 0.0
    %2241 = vmatprep.subr.mxu0 0.0
    %2242 = vmatpush1.msra.mxu0 0.0
    %2243 = vmatprep.subr.mxu0 0.0
    %2244 = vmatpush1.msra.mxu0 0.0
    %2245 = vmatprep.subr.mxu0 0.0
    %2246 = vmatpush1.msra.mxu0 0.0
    %2247 = vmatprep.subr.mxu0 0.0
    %2248 = vmatpush1.msra.mxu0 0.0
    %2249 = vmatprep.subr.mxu0 0.0
    %2250 = vmatpush1.msra.mxu0 0.0
    %2251 = vmatprep.subr.mxu0 0.0
    %2252 = vmatpush1.msra.mxu0 0.0
    %2253 = vmatprep.subr.mxu0 0.0
    %2254 = vmatpush1.msra.mxu0 0.0
    %2255 = vmatprep.subr.mxu0 0.0
    %2256 = vmatpush1.msra.mxu0 0.0
    %2257 = vmatprep.subr.mxu0 0.0
    %2258 = vmatpush1.msra.mxu0 0.0
    %2259 = vmatprep.subr.mxu0 0.0
    %2260 = vmatpush1.msra.mxu0 0.0
    %2261 = vmatprep.subr.mxu0 0.0
    %2262 = vmatpush1.msra.mxu0 0.0
    %2263 = vmatprep.subr.mxu0 0.0
    %2264 = vmatpush1.msra.mxu0 0.0
    %2265 = vmatprep.mubr.f32.mxu0 0.0
    %2266 = vmatmul.mubr.f32.gmra.mrb[0].mxu0 %v2190
    %v2267 = vpop.f32.mrb[0].mxu0
    %v2268 = vadd.f32 %v2175, %v2267
    %v2269 = vpop.f32.mrb[0].mxu0
    %2270 = vmatprep.mubr.f32.mxu0 0.0
    %2271 = vmatmul.mubr.f32.gmra.mrb[0].mxu0 %v2193
    %v2272 = vpop.f32.mrb[0].mxu0
    %v2273 = vadd.f32 %v2179, %v2272
    %v2274 = vpop.f32.mrb[0].mxu0
    %2275 = vmatprep.mubr.f32.mxu0 0.0
    %2276 = vmatmul.mubr.f32.gmra.mrb[0].mxu0 %v2196
    %v2277 = vpop.f32.mrb[0].mxu0
    %v2278 = vadd.f32 %v2183, %v2277
    %v2279 = vpop.f32.mrb[0].mxu0
    %2280 = vmatprep.mubr.f32.mxu0 0.0
    %2281 = vmatmul.mubr.f32.gmra.mrb[0].mxu0 %v2199
    %v2282 = vpop.f32.mrb[0].mxu0
    %v2283 = vadd.f32 %v2187, %v2282
    %v2284 = vpop.f32.mrb[0].mxu0
    %2285 = vdwg.mxu0
    %2286 = vst [vmem:[#allocation2] sm:$0xff] %v2268
    %2287 = vst [vmem:[#allocation2 + $0x8] sm:$0xff] %v2273
    %2288 = vst [vmem:[#allocation2 + $0x10] sm:$0xff] %v2278
    %2289 = vst [vmem:[#allocation2 + $0x18] sm:$0xff] %v2283
    // Predicated region
    $region42: #{tpu_custom_call.1} parent=1 // pred_check
      _
    $region43: #{tpu_custom_call.1} parent=1 // pred_check_branch
      %2291 = sbr.rel (0) target = $region45
    $region44: #{tpu_custom_call.1} parent=1 // pred_region
      %s2293 = ssub.s32 512, 512
      %2294 = vsyncadd [#allocation3], %s2293
      %s2295 = sshll.u32 [#allocation2], 4
      %s2296 = int_to_ptr.vmem [resolvable:$true] %s2295
      %2301 = dma.vmem_to_hbm [thread:$0]  %s2296, 512, %s10, [#allocation3], 128, 128, 8
    $region45: #{tpu_custom_call.1} parent=1 // pred_fallthru
      _
    // Predicated region
    $region46: #{tpu_custom_call.1} parent=1 // pred_check
      _
    $region47: #{tpu_custom_call.1} parent=1 // pred_check_branch
      %2303 = sbr.rel (0) target = $region49
    $region48: #{tpu_custom_call.1} parent=1 // pred_region
      %2304 = dma.done [#allocation3], 512
    $region49: #{tpu_custom_call.1} parent=1 // pred_fallthru
      _
    %2305 = vsyncpa [#allocation3], 1

</llo_original>
